<compile_context>
chip_gen: v5e
topology: v5e:2x2
jax: 0.10.0
libtpu: 0.0.40
codegen_flags: <defaults>
</compile_context>

<pallas_src>
import functools
import math

import jax
import jax.numpy as jnp
from jax.experimental import pallas as pl
from jax.experimental.pallas import tpu as pltpu

TM = 512                       # row tile (M = B*H*W) for matmul / elementwise
VMEM_LIMIT = 48 * 1024 * 1024  # <= v7x physical 64 MiB, fine on v5e/v6e


# ---------------------------------------------------------------------------
# Pallas kernels
# ---------------------------------------------------------------------------
def _mm_kernel(*refs, act, softmax_out, n_valid, has_res):
    """Fused  Y = softmax?(act(X @ W + b (+ residual)))  with K-axis reduction.

    Grid = (M tiles ['parallel'], K tiles ['arbitrary']).  f32 accumulator in
    VMEM scratch; epilogue (bias / residual / act / softmax) only on last K.
    """
    if has_res:
        x_ref, w_ref, b_ref, r_ref, o_ref, acc_ref = refs
    else:
        x_ref, w_ref, b_ref, o_ref, acc_ref = refs
        r_ref = None

    @pl.when(pl.program_id(1) == 0)
    def _init():
        acc_ref[...] = jnp.zeros_like(acc_ref)

    acc_ref[...] += jnp.dot(x_ref[...], w_ref[...],
                            preferred_element_type=jnp.float32)

    @pl.when(pl.program_id(1) == pl.num_programs(1) - 1)
    def _finalize():
        y = acc_ref[...] + b_ref[...].astype(jnp.float32)
        if r_ref is not None:                     # fused bottleneck residual
            y = y + r_ref[...].astype(jnp.float32)
        if act == "relu":
            y = jnp.maximum(y, 0.0)
        elif act == "leaky":                      # LeakyReLU(0.1)
            y = jnp.where(y >= 0.0, y, 0.1 * y)
        if softmax_out:                           # nn.Softmax(dim=1) over channels
            if n_valid < y.shape[-1]:             # mask lane-padding columns
                col = jax.lax.broadcasted_iota(jnp.int32, y.shape, 1)
                y = jnp.where(col < n_valid, y, -jnp.inf)
            m = jnp.max(y, axis=-1, keepdims=True)
            e = jnp.exp(y - m)
            y = e * pl.reciprocal(jnp.sum(e, axis=-1, keepdims=True), approx=True)
        o_ref[...] = y.astype(o_ref.dtype)


def _head_kernel(x_ref, w0_ref, b0_ref, w1_ref, b1_ref, o_ref, *, n_valid):
    """Fused transition head: leaky(X@W0+b0) -> leaky(.@W1+b1) -> softmax."""
    h = jnp.dot(x_ref[...], w0_ref[...], preferred_element_type=jnp.float32)
    h = h + b0_ref[...].astype(jnp.float32)
    h = jnp.where(h >= 0.0, h, 0.1 * h)                       # LeakyReLU(0.1)
    y = jnp.dot(h.astype(jnp.bfloat16), w1_ref[...],
                preferred_element_type=jnp.float32)
    y = y + b1_ref[...].astype(jnp.float32)
    y = jnp.where(y >= 0.0, y, 0.1 * y)
    if n_valid < y.shape[-1]:                                 # mask lane padding
        col = jax.lax.broadcasted_iota(jnp.int32, y.shape, 1)
        y = jnp.where(col < n_valid, y, -jnp.inf)
    m = jnp.max(y, axis=-1, keepdims=True)
    e = jnp.exp(y - m)
    y = e * pl.reciprocal(jnp.sum(e, axis=-1, keepdims=True), approx=True)
    o_ref[...] = y.astype(o_ref.dtype)


def _max9_kernel(s_ref, o_ref):
    """3x3 max-pool: max over the 9 stacked shifted views (row-tiled)."""
    o_ref[...] = jnp.max(s_ref[...], axis=0)


def _upfeat_kernel(s_ref, p_ref, o_ref):
    """upfeat(x, prob, 1, 1): per-pixel 9-way weighted sum of 3x3 neighbours.

    Accumulates tap-by-tap so the f32 working set stays (TM, C).
    """
    acc = s_ref[0].astype(jnp.float32) * p_ref[0].astype(jnp.float32)
    for t in range(1, 9):
        acc = acc + s_ref[t].astype(jnp.float32) * p_ref[t].astype(jnp.float32)
    o_ref[...] = acc.astype(o_ref.dtype)


def _pcm_kernel(x_ref, l_ref, o_ref, *, pcm, th):
    """PCM refinement: normalized affinity + repeated logits @ aff (per batch)."""
    x = x_ref[0].astype(jnp.float32)                         # (C, N)
    nrm = jnp.sqrt(jnp.sum(x * x, axis=0, keepdims=True))
    xn = x / jnp.maximum(nrm, 1e-12)                         # F.normalize(dim=1)
    aff = jax.lax.dot_general(xn, xn, (((0,), (0,)), ((), ())),
                              preferred_element_type=jnp.float32)   # (N, N)
    aff = jnp.clip(aff, 0.01, 0.999)
    if th == 0.5:
        aff = jnp.sqrt(aff)                                  # aff ** 0.5
    else:
        aff = aff ** th
    # torch: aff / aff.sum(1, True)  -> column j divided by sum_i aff[i, j]
    aff = aff * pl.reciprocal(jnp.sum(aff, axis=0, keepdims=True), approx=True)
    lg = l_ref[0].astype(jnp.float32)                        # (21, N)
    for _ in range(pcm):
        lg = jnp.dot(lg, aff, preferred_element_type=jnp.float32)
    o_ref[0] = lg


# ---------------------------------------------------------------------------
# Pallas wrappers
# ---------------------------------------------------------------------------
def matmul_fused(x, w, b, act=None, softmax_out=False, residual=None,
                 out_dtype=jnp.bfloat16):
    M, K = x.shape
    _, N = w.shape
    x = x.astype(jnp.bfloat16)
    w = w.astype(jnp.bfloat16)
    b = b.astype(jnp.float32)

    # Lane-dense output for the tiny heads (N = 9 / 21): pad to 128, slice after.
    Np = 128 if N < 32 else N
    if Np != N:
        w = jnp.pad(w, ((0, 0), (0, Np - N)))
        b = jnp.pad(b, ((0, Np - N),))

    # K-reduction tiling for the largest matmuls (keeps VMEM small on v7x and
    # overlaps weight DMA with compute); otherwise keep the whole K in VMEM.
    if K >= 4096 and K % 512 == 0:
        TK = 512
    else:
        TK = K
    nk = K // TK

    in_specs = [pl.BlockSpec((TM, TK), lambda i, k: (i, k)),
                pl.BlockSpec((TK, Np), lambda i, k: (k, 0)),
                pl.BlockSpec((1, Np), lambda i, k: (0, 0))]
    args = [x, w, b.reshape(1, Np)]
    has_res = residual is not None
    if has_res:
        r = residual.astype(jnp.bfloat16)
        if Np != N:
            r = jnp.pad(r, ((0, 0), (0, Np - N)))
        in_specs.append(pl.BlockSpec((TM, Np), lambda i, k: (i, 0)))
        args.append(r)

    kern = functools.partial(_mm_kernel, act=act, softmax_out=softmax_out,
                             n_valid=N, has_res=has_res)
    out = pl.pallas_call(
        kern,
        out_shape=jax.ShapeDtypeStruct((M, Np), out_dtype),
        grid=(pl.cdiv(M, TM), nk),                 # ragged last M block: OK
        in_specs=in_specs,
        out_specs=pl.BlockSpec((TM, Np), lambda i, k: (i, 0)),
        scratch_shapes=[pltpu.VMEM((TM, Np), jnp.float32)],
        compiler_params=pltpu.CompilerParams(
            dimension_semantics=("parallel", "arbitrary"),
            vmem_limit_bytes=VMEM_LIMIT),
    )(*args)
    if Np != N:
        out = out[:, :N]
    return out


def shifted_views(x, kh, kw, stride, pad, pad_value=0.0):
    """List of the kh*kw shifted/strided views of the padded input."""
    B, H, W, C = x.shape
    xp = jnp.pad(x, ((0, 0), (pad, pad), (pad, pad), (0, 0)),
                 constant_values=pad_value) if pad > 0 else x
    Hp, Wp = H + 2 * pad, W + 2 * pad
    Ho = (Hp - kh) // stride + 1
    Wo = (Wp - kw) // stride + 1
    views = [xp[:, i:i + stride * (Ho - 1) + 1:stride,
                j:j + stride * (Wo - 1) + 1:stride, :]
             for i in range(kh) for j in range(kw)]
    return views, Ho, Wo


def im2col_multi(xs, kh, kw, stride, pad):
    """im2col of channel-concatenated inputs, without the intermediate concat."""
    per_x_views = []
    Ho = Wo = None
    for x in xs:
        v, Ho, Wo = shifted_views(x, kh, kw, stride, pad)
        per_x_views.append(v)
    B = xs[0].shape[0]
    cols = []
    for t in range(kh * kw):                       # tap-major, inputs interleaved
        for v in per_x_views:
            cols.append(v[t])
    cin_tot = sum(x.shape[-1] for x in xs)
    patches = jnp.concatenate(cols, axis=-1).reshape(B * Ho * Wo, kh * kw * cin_tot)
    return patches, Ho, Wo


def conv2d(x, w, b, stride=1, pad=0, act=None, softmax_out=False,
           residual=None, out_dtype=jnp.bfloat16):
    """Conv2d (+folded BN bias) via im2col + fused Pallas matmul kernel."""
    B, H, W_, Cin = x.shape
    kh, kw, _, Cout = w.shape
    if kh == 1 and kw == 1 and pad == 0:
        xs = x[:, ::stride, ::stride, :] if stride != 1 else x
        _, Ho, Wo, _ = xs.shape
        patches = xs.reshape(B * Ho * Wo, Cin)
    else:
        patches, Ho, Wo = im2col_multi([x], kh, kw, stride, pad)
    res2d = residual.reshape(B * Ho * Wo, Cout) if residual is not None else None
    y = matmul_fused(patches, w.reshape(kh * kw * Cin, Cout), b,
                     act=act, softmax_out=softmax_out, residual=res2d,
                     out_dtype=out_dtype)
    return y.reshape(B, Ho, Wo, Cout)


def tran_head(f, q, p0, p1, out_dtype=jnp.float32):
    """get_tran_conv: conv3x3(cat[f,q])+leaky -> conv1x1+leaky -> softmax(ch).

    One fused Pallas kernel; the (B,h,w,256) concat and the (M,128) hidden
    activation never touch HBM.
    """
    B = f.shape[0]
    patches, Ho, Wo = im2col_multi([f, q], 3, 3, 1, 1)
    M, K = patches.shape
    C0 = p0["w"].shape[-1]                                   # 128 hidden
    N = p1["w"].shape[-1]                                    # 9 outputs
    Np = 128                                                 # lane-dense store
    w0 = p0["w"].reshape(K, C0).astype(jnp.bfloat16)
    b0 = p0["b"].astype(jnp.float32).reshape(1, C0)
    w1 = jnp.pad(p1["w"].reshape(C0, N).astype(jnp.bfloat16),
                 ((0, 0), (0, Np - N)))
    b1 = jnp.pad(p1["b"].astype(jnp.float32), (0, Np - N)).reshape(1, Np)
    kern = functools.partial(_head_kernel, n_valid=N)
    out = pl.pallas_call(
        kern,
        out_shape=jax.ShapeDtypeStruct((M, Np), out_dtype),
        grid=(pl.cdiv(M, TM),),
        in_specs=[pl.BlockSpec((TM, K), lambda i: (i, 0)),
                  pl.BlockSpec((K, C0), lambda i: (0, 0)),
                  pl.BlockSpec((1, C0), lambda i: (0, 0)),
                  pl.BlockSpec((C0, Np), lambda i: (0, 0)),
                  pl.BlockSpec((1, Np), lambda i: (0, 0))],
        out_specs=pl.BlockSpec((TM, Np), lambda i: (i, 0)),
        compiler_params=pltpu.CompilerParams(
            dimension_semantics=("parallel",),
            vmem_limit_bytes=VMEM_LIMIT),
    )(patches.astype(jnp.bfloat16), w0, b0, w1, b1)
    return out[:, :N].reshape(B, Ho, Wo, N)


def maxpool_3x3_s2(x):
    B, H, W, C = x.shape
    views, Ho, Wo = shifted_views(x, 3, 3, 2, 1, pad_value=-1e30)
    M = B * Ho * Wo
    st = jnp.stack(views, axis=0).reshape(9, M, C)
    out = pl.pallas_call(
        _max9_kernel,
        out_shape=jax.ShapeDtypeStruct((M, C), x.dtype),
        grid=(pl.cdiv(M, TM),),
        in_specs=[pl.BlockSpec((9, TM, C), lambda i: (0, i, 0))],
        out_specs=pl.BlockSpec((TM, C), lambda i: (i, 0)),
        compiler_params=pltpu.CompilerParams(
            dimension_semantics=("parallel",),
            vmem_limit_bytes=VMEM_LIMIT),
    )(st)
    return out.reshape(B, Ho, Wo, C)


def upfeat(feat, prob, out_dtype=None):
    """SpixelFCN upfeat(feat, prob, 1, 1). feat NHWC, prob (B,H,W,9)."""
    B, H, W, C = feat.shape
    out_dtype = out_dtype or feat.dtype
    views, _, _ = shifted_views(feat, 3, 3, 1, 1, 0.0)     # zero padding (torch)
    M = B * H * W
    st = jnp.stack(views, axis=0).reshape(9, M, C)
    pr = jnp.moveaxis(prob, -1, 0).reshape(9, M, 1)
    out = pl.pallas_call(
        _upfeat_kernel,
        out_shape=jax.ShapeDtypeStruct((M, C), out_dtype),
        grid=(pl.cdiv(M, TM),),
        in_specs=[pl.BlockSpec((9, TM, C), lambda i: (0, i, 0)),
                  pl.BlockSpec((9, TM, 1), lambda i: (0, i, 0))],
        out_specs=pl.BlockSpec((TM, C), lambda i: (i, 0)),
        compiler_params=pltpu.CompilerParams(
            dimension_semantics=("parallel",),
            vmem_limit_bytes=VMEM_LIMIT),
    )(st, pr)
    return out.reshape(B, H, W, C)


def pcm_refine(x4, logits, pcm, th):
    """PCM branch. x4, logits are NHWC; returns logits in NCHW."""
    B, H, W, C = x4.shape
    Nc = logits.shape[-1]
    N = H * W
    x = jnp.transpose(x4, (0, 3, 1, 2)).reshape(B, C, N)
    lg = jnp.transpose(logits, (0, 3, 1, 2)).reshape(B, Nc, N)
    kern = functools.partial(_pcm_kernel, pcm=pcm, th=th)
    out = pl.pallas_call(
        kern,
        out_shape=jax.ShapeDtypeStruct((B, Nc, N), jnp.float32),
        grid=(B,),
        in_specs=[pl.BlockSpec((1, C, N), lambda b: (b, 0, 0)),
                  pl.BlockSpec((1, Nc, N), lambda b: (b, 0, 0))],
        out_specs=pl.BlockSpec((1, Nc, N), lambda b: (b, 0, 0)),
        compiler_params=pltpu.CompilerParams(
            dimension_semantics=("parallel",),     # batches independent (2 TCs)
            vmem_limit_bytes=VMEM_LIMIT),
    )(x, lg)
    return out.reshape(B, Nc, H, W)


# ---------------------------------------------------------------------------
# Deterministic parameter construction (shapes from the module __init__)
# ---------------------------------------------------------------------------
def conv_bn_params(key, kh, kw, cin, cout):
    """Conv(bias=False) + BatchNorm(eval) folded into (w, b). Weights -> bf16."""
    ks = jax.random.split(key, 5)
    w = jax.random.normal(ks[0], (kh, kw, cin, cout), jnp.float32) / math.sqrt(kh * kw * cin)
    gamma = 1.0 + 0.1 * jax.random.normal(ks[1], (cout,), jnp.float32)
    beta = 0.05 * jax.random.normal(ks[2], (cout,), jnp.float32)
    mean = 0.05 * jax.random.normal(ks[3], (cout,), jnp.float32)
    var = 1.0 + 0.1 * jax.random.uniform(ks[4], (cout,), jnp.float32)
    scale = gamma / jnp.sqrt(var + 1e-5)
    return {"w": (w * scale).astype(jnp.bfloat16),
            "b": (beta - mean * scale).astype(jnp.float32)}


def conv_bias_params(key, kh, kw, cin, cout):
    """Conv(bias=True) branch of the SpixelFCN `conv` helper."""
    k0, k1 = jax.random.split(key)
    w = jax.random.normal(k0, (kh, kw, cin, cout), jnp.float32) / math.sqrt(kh * kw * cin)
    b = 0.05 * jax.random.normal(k1, (cout,), jnp.float32)
    return {"w": w.astype(jnp.bfloat16), "b": b}


def make_layer(key, inplanes, planes, blocks, stride):
    params = []
    for bi in range(blocks):
        s = stride if bi == 0 else 1
        key, k1, k2, k3, k4 = jax.random.split(key, 5)
        blk = {"stride": s,
               "c1": conv_bn_params(k1, 1, 1, inplanes, planes),
               "c2": conv_bn_params(k2, 3, 3, planes, planes),
               "c3": conv_bn_params(k3, 1, 1, planes, planes * 4)}
        if s != 1 or inplanes != planes * 4:
            blk["ds"] = conv_bn_params(k4, 1, 1, inplanes, planes * 4)
        params.append(blk)
        inplanes = planes * 4
    return params, inplanes


def init_params(key, num_classes=21):
    keys = jax.random.split(key, 16)
    p = {}
    # ResNet-50 backbone, strides (2, 2, 2, 1)
    p["conv1"] = conv_bn_params(keys[0], 7, 7, 3, 64)
    inpl = 64
    p["layer1"], inpl = make_layer(keys[1], inpl, 64, 3, 1)
    p["layer2"], inpl = make_layer(keys[2], inpl, 128, 4, 2)
    p["layer3"], inpl = make_layer(keys[3], inpl, 256, 6, 2)
    p["layer4"], inpl = make_layer(keys[4], inpl, 512, 3, 1)
    # SP-CAM heads
    ch_q = 32
    p["qf1"] = conv_bn_params(keys[5], 4, 4, 9, ch_q)           # conv(True, 9, 32, 4, s=4)
    p["qf2"] = conv_bn_params(keys[6], 4, 4, ch_q, ch_q * 4)    # conv(True, 32, 128, 4, s=4)
    p["qf3"] = conv_bias_params(keys[7], 3, 3, ch_q * 4, ch_q * 4)
    p["x4_feats"] = conv_bn_params(keys[8], 1, 1, 1024, 128)
    p["x5_feats"] = conv_bn_params(keys[9], 1, 1, 2048, 128)
    p["tc4_0"] = conv_bias_params(keys[10], 3, 3, ch_q * 4 + 128, 128)
    p["tc4_1"] = conv_bias_params(keys[11], 1, 1, 128, 9)
    p["tc5_0"] = conv_bias_params(keys[12], 3, 3, ch_q * 4 + 128, 128)
    p["tc5_1"] = conv_bias_params(keys[13], 1, 1, 128, 9)
    p["cls_w"] = (jax.random.normal(keys[14], (1, 1, 2048, num_classes),
                                    jnp.float32) / math.sqrt(2048)
                  ).astype(jnp.bfloat16)                        # bias=False
    return p


def run_layer(x, layer_params):
    for blk in layer_params:
        s = blk["stride"]
        out = conv2d(x, blk["c1"]["w"], blk["c1"]["b"], act="relu")
        out = conv2d(out, blk["c2"]["w"], blk["c2"]["b"], stride=s, pad=1, act="relu")
        if "ds" in blk:
            idn = conv2d(x, blk["ds"]["w"], blk["ds"]["b"], stride=s, act=None)
        else:
            idn = x
        # Residual add + ReLU fused into the c3 conv epilogue.
        x = conv2d(out, blk["c3"]["w"], blk["c3"]["b"], act="relu", residual=idn)
    return x


# ---------------------------------------------------------------------------
# SP_CAM_Model2.forward
# ---------------------------------------------------------------------------
def sp_cam_model2_forward(params, inputs, probs, pcm=0, th=0.5):
    """inputs: (B,3,H,W) NCHW, probs: (B,9,H,W) NCHW -> (logits NCHW, logits_min)."""
    x = jnp.transpose(inputs, (0, 2, 3, 1)).astype(jnp.bfloat16)   # NHWC, bf16
    pr = jnp.transpose(probs, (0, 2, 3, 1)).astype(jnp.bfloat16)
    num_classes = params["cls_w"].shape[-1]
    cls_b = jnp.zeros((num_classes,), jnp.float32)

    # get_qfeats(probs)
    q = conv2d(pr, params["qf1"]["w"], params["qf1"]["b"], stride=4, pad=1, act="leaky")
    q = conv2d(q, params["qf2"]["w"], params["qf2"]["b"], stride=4, pad=1, act="leaky")
    q = conv2d(q, params["qf3"]["w"], params["qf3"]["b"], stride=1, pad=1, act="leaky")

    # backbone stages 1-4
    x1 = conv2d(x, params["conv1"]["w"], params["conv1"]["b"], stride=2, pad=3, act="relu")
    x1 = maxpool_3x3_s2(x1)
    x2 = run_layer(x1, params["layer1"])
    x3 = run_layer(x2, params["layer2"])
    x4 = run_layer(x3, params["layer3"])

    # x4 transition (fused head) + upfeat
    f4 = conv2d(x4, params["x4_feats"]["w"], params["x4_feats"]["b"], act="leaky")
    x4_dp = tran_head(f4, q, params["tc4_0"], params["tc4_1"])
    x4 = upfeat(x4, x4_dp)

    # stage 5 + x5 transition (fused head)
    x5 = run_layer(x4, params["layer4"])
    f5 = conv2d(x5, params["x5_feats"]["w"], params["x5_feats"]["b"], act="leaky")
    x5_dp = tran_head(f5, q, params["tc5_0"], params["tc5_1"])

    # classifier; bias-free & linear, so
    # classifier(adaptive_avg_pool2d(x5,1)) == mean over (h,w) of these logits.
    logits = conv2d(x5, params["cls_w"], cls_b, act=None,
                    out_dtype=jnp.float32)                          # (B,h,w,21)
    logits_min = jnp.mean(logits, axis=(1, 2)).reshape(-1, num_classes, 1, 1)
    logits = upfeat(logits, x5_dp, out_dtype=jnp.float32)

    if pcm > 0:
        logits_nchw = pcm_refine(x4, logits, pcm=pcm, th=th)
    else:
        logits_nchw = jnp.transpose(logits, (0, 3, 1, 2))
    return logits_nchw, logits_min


# ---------------------------------------------------------------------------
if __name__ == "__main__":
    key = jax.random.PRNGKey(0)
    kp, ki, kq = jax.random.split(key, 3)

    params = init_params(kp, num_classes=21)

    B, H, W = 2, 64, 64
    inputs = jax.random.normal(ki, (B, 3, H, W), jnp.float32)
    probs = jax.nn.softmax(jax.random.normal(kq, (B, 9, H, W), jnp.float32), axis=1)

    # pcm=1 exercises the PCM affinity kernel (pcm=0 path also works).
    logits, logits_min = sp_cam_model2_forward(params, inputs, probs, pcm=1, th=0.5)
    (logits, logits_min) = jax.block_until_ready((logits, logits_min))

    assert logits.shape == (B, 21, H // 16, W // 16), logits.shape
    assert logits_min.shape == (B, 21, 1, 1), logits_min.shape
    assert bool(jnp.all(jnp.isfinite(logits))) and bool(jnp.all(jnp.isfinite(logits_min)))
    print("KERNEL_OK")
</pallas_src>

<mosaic_0001>
module attributes {stable_mosaic.version = 11 : i64} {
  func.func @_mm_kernel(%arg0: i32, %arg1: i32, %arg2: memref<512x144xbf16, #tpu.memory_space<vmem>>, %arg3: memref<144x32xbf16, #tpu.memory_space<vmem>>, %arg4: memref<1x32xf32, #tpu.memory_space<vmem>>, %arg5: memref<512x32xbf16, #tpu.memory_space<vmem>>, %arg6: memref<512x32xf32, #tpu.memory_space<vmem>>) attributes {dimension_semantics = [#tpu.dimension_semantics<parallel>, #tpu.dimension_semantics<arbitrary>], iteration_bounds = array<i64: 1, 1>, scalar_prefetch = 0 : i64, scratch_operands = 1 : i64, tpu.core_type = #tpu.core_type<tc>, window_params = [{transform_indices = @transform_0, window_bounds = array<i64: 512, 144>}, {transform_indices = @transform_1, window_bounds = array<i64: 144, 32>}, {pipeline_mode = #tpu.pipeline_mode<synchronous>, transform_indices = @transform_2, window_bounds = array<i64: 1, 32>}, {transform_indices = @transform_3, window_bounds = array<i64: 512, 32>}]} {
    %c0_i32 = arith.constant 0 : i32
    %0 = arith.cmpi eq, %arg1, %c0_i32 : i32
    %1 = arith.extui %0 : i1 to i32
    %c0_i32_0 = arith.constant 0 : i32
    %2 = arith.cmpi ne, %1, %c0_i32_0 : i32
    scf.if %2 {
      %cst_10 = arith.constant 0.000000e+00 : f32
      %12 = vector.broadcast %cst_10 : f32 to vector<512x32xf32>
      %c0_11 = arith.constant 0 : index
      %c0_12 = arith.constant 0 : index
      %13 = vector.load %arg6[%c0_11, %c0_12] : memref<512x32xf32, #tpu.memory_space<vmem>>, vector<512x32xf32>
      tpu.vector_store %arg6[%c0_11, %c0_12], %12 {strides = array<i32>} : memref<512x32xf32, #tpu.memory_space<vmem>>, vector<512x32xf32>,
    } else {
    }
    %c0 = arith.constant 0 : index
    %c0_1 = arith.constant 0 : index
    %3 = vector.load %arg6[%c0, %c0_1] : memref<512x32xf32, #tpu.memory_space<vmem>>, vector<512x32xf32>
    %c0_2 = arith.constant 0 : index
    %c0_3 = arith.constant 0 : index
    %4 = vector.load %arg2[%c0_2, %c0_3] : memref<512x144xbf16, #tpu.memory_space<vmem>>, vector<512x144xbf16>
    %c0_4 = arith.constant 0 : index
    %c0_5 = arith.constant 0 : index
    %5 = vector.load %arg3[%c0_4, %c0_5] : memref<144x32xbf16, #tpu.memory_space<vmem>>, vector<144x32xbf16>
    %cst = arith.constant dense<0.000000e+00> : vector<512x32xf32>
    %6 = tpu.matmul %4, %5, %cst {dimension_numbers = #tpu.dot_dimension_numbers<[1], [0], [0], [1], [0, 0, 1, 1], [], []>} : vector<512x144xbf16>, vector<144x32xbf16>, vector<512x32xf32> -> vector<512x32xf32>
    %7 = arith.addf %3, %6 : vector<512x32xf32>
    %c0_6 = arith.constant 0 : index
    %c0_7 = arith.constant 0 : index
    %8 = vector.load %arg6[%c0_6, %c0_7] : memref<512x32xf32, #tpu.memory_space<vmem>>, vector<512x32xf32>
    tpu.vector_store %arg6[%c0_6, %c0_7], %7 {strides = array<i32>} : memref<512x32xf32, #tpu.memory_space<vmem>>, vector<512x32xf32>,
    %c0_i32_8 = arith.constant 0 : i32
    %9 = arith.cmpi eq, %arg1, %c0_i32_8 : i32
    %10 = arith.extui %9 : i1 to i32
    %c0_i32_9 = arith.constant 0 : i32
    %11 = arith.cmpi ne, %10, %c0_i32_9 : i32
    scf.if %11 {
      %c0_10 = arith.constant 0 : index
      %c0_11 = arith.constant 0 : index
      %12 = vector.load %arg6[%c0_10, %c0_11] : memref<512x32xf32, #tpu.memory_space<vmem>>, vector<512x32xf32>
      %c0_12 = arith.constant 0 : index
      %c0_13 = arith.constant 0 : index
      %13 = vector.load %arg4[%c0_12, %c0_13] : memref<1x32xf32, #tpu.memory_space<vmem>>, vector<1x32xf32>
      %14 = vector.broadcast %13 : vector<1x32xf32> to vector<512x32xf32>
      %15 = arith.addf %12, %14 : vector<512x32xf32>
      %cst_14 = arith.constant 0.000000e+00 : f32
      %16 = vector.broadcast %cst_14 : f32 to vector<512x32xf32>
      %17 = arith.cmpf oge, %15, %16 : vector<512x32xf32>
      %cst_15 = arith.constant 1.000000e-01 : f32
      %18 = vector.broadcast %cst_15 : f32 to vector<512x32xf32>
      %19 = arith.mulf %18, %15 : vector<512x32xf32>
      %20 = arith.select %17, %15, %19 : vector<512x32xi1>, vector<512x32xf32>
      %21 = arith.truncf %20 : vector<512x32xf32> to vector<512x32xbf16>
      %c0_16 = arith.constant 0 : index
      %c0_17 = arith.constant 0 : index
      %22 = vector.load %arg5[%c0_16, %c0_17] : memref<512x32xbf16, #tpu.memory_space<vmem>>, vector<512x32xbf16>
      tpu.vector_store %arg5[%c0_16, %c0_17], %21 {strides = array<i32>} : memref<512x32xbf16, #tpu.memory_space<vmem>>, vector<512x32xbf16>,
    } else {
    }
    return
  }
  func.func @transform_0(%arg0: i32, %arg1: i32) -> (i32, i32) {
    %c0_i32 = arith.constant 0 : i32
    return %arg0, %arg1 : i32, i32
  }
  func.func @transform_1(%arg0: i32, %arg1: i32) -> (i32, i32) {
    %c0_i32 = arith.constant 0 : i32
    %c0_i32_0 = arith.constant 0 : i32
    return %arg1, %c0_i32 : i32, i32
  }
  func.func @transform_2(%arg0: i32, %arg1: i32) -> (i32, i32) {
    %c0_i32 = arith.constant 0 : i32
    %c0_i32_0 = arith.constant 0 : i32
    %c0_i32_1 = arith.constant 0 : i32
    return %c0_i32, %c0_i32_0 : i32, i32
  }
  func.func @transform_3(%arg0: i32, %arg1: i32) -> (i32, i32) {
    %c0_i32 = arith.constant 0 : i32
    %c0_i32_0 = arith.constant 0 : i32
    return %arg0, %c0_i32 : i32, i32
  }
}

</mosaic_0001>

<llo_original>
// kernel: tpu_custom_call.1
$region0: #{tpu_custom_call.1}
  #allocation0 [shape = 'u32[]', space=smem, size = 0x4, offset = 0x4, fixed_abs, tag = 'smem constant byte address 0x4 - core index']
  #allocation1 [shape = 'u32[72,128]{1,0:T(1,128)}', space=vmem, size = 0x9000, scoped, tag = 'internal scratch']
  #allocation2 [shape = 'f32[512,32]{1,0:T(8,128)}', space=vmem, size = 0x40000, scoped, tag = 'scratch operand']
  %s0 = inlined_call_operand.vmem [shape: bf16[512,144], index: 0, kind: input, shape index: {}]
  %s1 = inlined_call_operand.vmem [shape: bf16[144,32], index: 1, kind: input, shape index: {}]
  %s2 = inlined_call_operand.vmem [shape: f32[1,32], index: 2, kind: input, shape index: {}]
  %s3 = inlined_call_operand.vmem [shape: bf16[512,32], index: 3, kind: output, shape index: {}]
  %s4 = sld [smem:[#allocation0]]
  $region30: #{tpu_custom_call.1} parent=0
    _
  %s6 = ssub.s32 1, %s4
  %s7 = scalar_select 0, %s6, %s4
  // Predicated region
  $region2: #{tpu_custom_call.1} parent=0 // pred_check
    _
  $region3: #{tpu_custom_call.1} parent=0 // pred_check_branch
    %9 = sbr.rel (0) target = $region5
  $region4: #{tpu_custom_call.1} parent=0 // pred_region
    _
  $region5: #{tpu_custom_call.1} parent=0 // pred_fallthru
    _
  // Predicated region
  $region6: #{tpu_custom_call.1} parent=0 // pred_check
    _
  $region7: #{tpu_custom_call.1} parent=0 // pred_check_branch
    %11 = sbr.rel (0) target = $region9
  $region8: #{tpu_custom_call.1} parent=0 // pred_region
    _
  $region9: #{tpu_custom_call.1} parent=0 // pred_fallthru
    _
  // Predicated region
  $region10: #{tpu_custom_call.1} parent=0 // pred_check
    _
  $region11: #{tpu_custom_call.1} parent=0 // pred_check_branch
    %13 = sbr.rel (0) target = $region13
  $region12: #{tpu_custom_call.1} parent=0 // pred_region
    _
  $region13: #{tpu_custom_call.1} parent=0 // pred_fallthru
    _
  %p15 = scmp.eq.s32.totalorder 0, 0
  // Predicated region
  $region14: #{tpu_custom_call.1} parent=0 // pred_check
    %p16 = pneg %p15
  $region15: #{tpu_custom_call.1} parent=0 // pred_check_branch
    %18 = sbr.rel (%p16) target = $region17
  $region16: #{tpu_custom_call.1} parent=0 // pred_region
    %vm19 = vcmask 261120
    %20 = vst.msk [vmem:[#allocation2] sm:$0xff] %vm19, 0.0
    %21 = vst.msk [vmem:[#allocation2 + $0x8] sm:$0xff] %vm19, 0.0
    %22 = vst.msk [vmem:[#allocation2 + $0x10] sm:$0xff] %vm19, 0.0
    %23 = vst.msk [vmem:[#allocation2 + $0x18] sm:$0xff] %vm19, 0.0
    %24 = vst.msk [vmem:[#allocation2 + $0x20] sm:$0xff] %vm19, 0.0
    %25 = vst.msk [vmem:[#allocation2 + $0x28] sm:$0xff] %vm19, 0.0
    %26 = vst.msk [vmem:[#allocation2 + $0x30] sm:$0xff] %vm19, 0.0
    %27 = vst.msk [vmem:[#allocation2 + $0x38] sm:$0xff] %vm19, 0.0
    %28 = vst.msk [vmem:[#allocation2 + $0x40] sm:$0xff] %vm19, 0.0
    %29 = vst.msk [vmem:[#allocation2 + $0x48] sm:$0xff] %vm19, 0.0
    %30 = vst.msk [vmem:[#allocation2 + $0x50] sm:$0xff] %vm19, 0.0
    %31 = vst.msk [vmem:[#allocation2 + $0x58] sm:$0xff] %vm19, 0.0
    %32 = vst.msk [vmem:[#allocation2 + $0x60] sm:$0xff] %vm19, 0.0
    %33 = vst.msk [vmem:[#allocation2 + $0x68] sm:$0xff] %vm19, 0.0
    %34 = vst.msk [vmem:[#allocation2 + $0x70] sm:$0xff] %vm19, 0.0
    %35 = vst.msk [vmem:[#allocation2 + $0x78] sm:$0xff] %vm19, 0.0
    %36 = vst.msk [vmem:[#allocation2 + $0x80] sm:$0xff] %vm19, 0.0
    %37 = vst.msk [vmem:[#allocation2 + $0x88] sm:$0xff] %vm19, 0.0
    %38 = vst.msk [vmem:[#allocation2 + $0x90] sm:$0xff] %vm19, 0.0
    %39 = vst.msk [vmem:[#allocation2 + $0x98] sm:$0xff] %vm19, 0.0
    %40 = vst.msk [vmem:[#allocation2 + $0xa0] sm:$0xff] %vm19, 0.0
    %41 = vst.msk [vmem:[#allocation2 + $0xa8] sm:$0xff] %vm19, 0.0
    %42 = vst.msk [vmem:[#allocation2 + $0xb0] sm:$0xff] %vm19, 0.0
    %43 = vst.msk [vmem:[#allocation2 + $0xb8] sm:$0xff] %vm19, 0.0
    %44 = vst.msk [vmem:[#allocation2 + $0xc0] sm:$0xff] %vm19, 0.0
    %45 = vst.msk [vmem:[#allocation2 + $0xc8] sm:$0xff] %vm19, 0.0
    %46 = vst.msk [vmem:[#allocation2 + $0xd0] sm:$0xff] %vm19, 0.0
    %47 = vst.msk [vmem:[#allocation2 + $0xd8] sm:$0xff] %vm19, 0.0
    %48 = vst.msk [vmem:[#allocation2 + $0xe0] sm:$0xff] %vm19, 0.0
    %49 = vst.msk [vmem:[#allocation2 + $0xe8] sm:$0xff] %vm19, 0.0
    %50 = vst.msk [vmem:[#allocation2 + $0xf0] sm:$0xff] %vm19, 0.0
    %51 = vst.msk [vmem:[#allocation2 + $0xf8] sm:$0xff] %vm19, 0.0
    %52 = vst.msk [vmem:[#allocation2 + $0x100] sm:$0xff] %vm19, 0.0
    %53 = vst.msk [vmem:[#allocation2 + $0x108] sm:$0xff] %vm19, 0.0
    %54 = vst.msk [vmem:[#allocation2 + $0x110] sm:$0xff] %vm19, 0.0
    %55 = vst.msk [vmem:[#allocation2 + $0x118] sm:$0xff] %vm19, 0.0
    %56 = vst.msk [vmem:[#allocation2 + $0x120] sm:$0xff] %vm19, 0.0
    %57 = vst.msk [vmem:[#allocation2 + $0x128] sm:$0xff] %vm19, 0.0
    %58 = vst.msk [vmem:[#allocation2 + $0x130] sm:$0xff] %vm19, 0.0
    %59 = vst.msk [vmem:[#allocation2 + $0x138] sm:$0xff] %vm19, 0.0
    %60 = vst.msk [vmem:[#allocation2 + $0x140] sm:$0xff] %vm19, 0.0
    %61 = vst.msk [vmem:[#allocation2 + $0x148] sm:$0xff] %vm19, 0.0
    %62 = vst.msk [vmem:[#allocation2 + $0x150] sm:$0xff] %vm19, 0.0
    %63 = vst.msk [vmem:[#allocation2 + $0x158] sm:$0xff] %vm19, 0.0
    %64 = vst.msk [vmem:[#allocation2 + $0x160] sm:$0xff] %vm19, 0.0
    %65 = vst.msk [vmem:[#allocation2 + $0x168] sm:$0xff] %vm19, 0.0
    %66 = vst.msk [vmem:[#allocation2 + $0x170] sm:$0xff] %vm19, 0.0
    %67 = vst.msk [vmem:[#allocation2 + $0x178] sm:$0xff] %vm19, 0.0
    %68 = vst.msk [vmem:[#allocation2 + $0x180] sm:$0xff] %vm19, 0.0
    %69 = vst.msk [vmem:[#allocation2 + $0x188] sm:$0xff] %vm19, 0.0
    %70 = vst.msk [vmem:[#allocation2 + $0x190] sm:$0xff] %vm19, 0.0
    %71 = vst.msk [vmem:[#allocation2 + $0x198] sm:$0xff] %vm19, 0.0
    %72 = vst.msk [vmem:[#allocation2 + $0x1a0] sm:$0xff] %vm19, 0.0
    %73 = vst.msk [vmem:[#allocation2 + $0x1a8] sm:$0xff] %vm19, 0.0
    %74 = vst.msk [vmem:[#allocation2 + $0x1b0] sm:$0xff] %vm19, 0.0
    %75 = vst.msk [vmem:[#allocation2 + $0x1b8] sm:$0xff] %vm19, 0.0
    %76 = vst.msk [vmem:[#allocation2 + $0x1c0] sm:$0xff] %vm19, 0.0
    %77 = vst.msk [vmem:[#allocation2 + $0x1c8] sm:$0xff] %vm19, 0.0
    %78 = vst.msk [vmem:[#allocation2 + $0x1d0] sm:$0xff] %vm19, 0.0
    %79 = vst.msk [vmem:[#allocation2 + $0x1d8] sm:$0xff] %vm19, 0.0
    %80 = vst.msk [vmem:[#allocation2 + $0x1e0] sm:$0xff] %vm19, 0.0
    %81 = vst.msk [vmem:[#allocation2 + $0x1e8] sm:$0xff] %vm19, 0.0
    %82 = vst.msk [vmem:[#allocation2 + $0x1f0] sm:$0xff] %vm19, 0.0
    %83 = vst.msk [vmem:[#allocation2 + $0x1f8] sm:$0xff] %vm19, 0.0
  $region17: #{tpu_custom_call.1} parent=0 // pred_fallthru
    _
  %v84 = vld [vmem:[#allocation2] sm:$0xff]
  %v85 = vld [vmem:[#allocation2 + $0x8] sm:$0xff]
  %v86 = vld [vmem:[#allocation2 + $0x10] sm:$0xff]
  %v87 = vld [vmem:[#allocation2 + $0x18] sm:$0xff]
  %v88 = vld [vmem:[#allocation2 + $0x20] sm:$0xff]
  %v89 = vld [vmem:[#allocation2 + $0x28] sm:$0xff]
  %v90 = vld [vmem:[#allocation2 + $0x30] sm:$0xff]
  %v91 = vld [vmem:[#allocation2 + $0x38] sm:$0xff]
  %v92 = vld [vmem:[#allocation2 + $0x40] sm:$0xff]
  %v93 = vld [vmem:[#allocation2 + $0x48] sm:$0xff]
  %v94 = vld [vmem:[#allocation2 + $0x50] sm:$0xff]
  %v95 = vld [vmem:[#allocation2 + $0x58] sm:$0xff]
  %v96 = vld [vmem:[#allocation2 + $0x60] sm:$0xff]
  %v97 = vld [vmem:[#allocation2 + $0x68] sm:$0xff]
  %v98 = vld [vmem:[#allocation2 + $0x70] sm:$0xff]
  %v99 = vld [vmem:[#allocation2 + $0x78] sm:$0xff]
  %v100 = vld [vmem:[#allocation2 + $0x80] sm:$0xff]
  %v101 = vld [vmem:[#allocation2 + $0x88] sm:$0xff]
  %v102 = vld [vmem:[#allocation2 + $0x90] sm:$0xff]
  %v103 = vld [vmem:[#allocation2 + $0x98] sm:$0xff]
  %v104 = vld [vmem:[#allocation2 + $0xa0] sm:$0xff]
  %v105 = vld [vmem:[#allocation2 + $0xa8] sm:$0xff]
  %v106 = vld [vmem:[#allocation2 + $0xb0] sm:$0xff]
  %v107 = vld [vmem:[#allocation2 + $0xb8] sm:$0xff]
  %v108 = vld [vmem:[#allocation2 + $0xc0] sm:$0xff]
  %v109 = vld [vmem:[#allocation2 + $0xc8] sm:$0xff]
  %v110 = vld [vmem:[#allocation2 + $0xd0] sm:$0xff]
  %v111 = vld [vmem:[#allocation2 + $0xd8] sm:$0xff]
  %v112 = vld [vmem:[#allocation2 + $0xe0] sm:$0xff]
  %v113 = vld [vmem:[#allocation2 + $0xe8] sm:$0xff]
  %v114 = vld [vmem:[#allocation2 + $0xf0] sm:$0xff]
  %v115 = vld [vmem:[#allocation2 + $0xf8] sm:$0xff]
  %v116 = vld [vmem:[#allocation2 + $0x100] sm:$0xff]
  %v117 = vld [vmem:[#allocation2 + $0x108] sm:$0xff]
  %v118 = vld [vmem:[#allocation2 + $0x110] sm:$0xff]
  %v119 = vld [vmem:[#allocation2 + $0x118] sm:$0xff]
  %v120 = vld [vmem:[#allocation2 + $0x120] sm:$0xff]
  %v121 = vld [vmem:[#allocation2 + $0x128] sm:$0xff]
  %v122 = vld [vmem:[#allocation2 + $0x130] sm:$0xff]
  %v123 = vld [vmem:[#allocation2 + $0x138] sm:$0xff]
  %v124 = vld [vmem:[#allocation2 + $0x140] sm:$0xff]
  %v125 = vld [vmem:[#allocation2 + $0x148] sm:$0xff]
  %v126 = vld [vmem:[#allocation2 + $0x150] sm:$0xff]
  %v127 = vld [vmem:[#allocation2 + $0x158] sm:$0xff]
  %v128 = vld [vmem:[#allocation2 + $0x160] sm:$0xff]
  %v129 = vld [vmem:[#allocation2 + $0x168] sm:$0xff]
  %v130 = vld [vmem:[#allocation2 + $0x170] sm:$0xff]
  %v131 = vld [vmem:[#allocation2 + $0x178] sm:$0xff]
  %v132 = vld [vmem:[#allocation2 + $0x180] sm:$0xff]
  %v133 = vld [vmem:[#allocation2 + $0x188] sm:$0xff]
  %v134 = vld [vmem:[#allocation2 + $0x190] sm:$0xff]
  %v135 = vld [vmem:[#allocation2 + $0x198] sm:$0xff]
  %v136 = vld [vmem:[#allocation2 + $0x1a0] sm:$0xff]
  %v137 = vld [vmem:[#allocation2 + $0x1a8] sm:$0xff]
  %v138 = vld [vmem:[#allocation2 + $0x1b0] sm:$0xff]
  %v139 = vld [vmem:[#allocation2 + $0x1b8] sm:$0xff]
  %v140 = vld [vmem:[#allocation2 + $0x1c0] sm:$0xff]
  %v141 = vld [vmem:[#allocation2 + $0x1c8] sm:$0xff]
  %v142 = vld [vmem:[#allocation2 + $0x1d0] sm:$0xff]
  %v143 = vld [vmem:[#allocation2 + $0x1d8] sm:$0xff]
  %v144 = vld [vmem:[#allocation2 + $0x1e0] sm:$0xff]
  %v145 = vld [vmem:[#allocation2 + $0x1e8] sm:$0xff]
  %v146 = vld [vmem:[#allocation2 + $0x1f0] sm:$0xff]
  %v147 = vld [vmem:[#allocation2 + $0x1f8] sm:$0xff]
  %v148 = vld [vmem:[%s0] sm:$0xff]
  %v149 = vld [vmem:[%s0 + $0x8] sm:$0xff]
  %v150 = vld [vmem:[%s0 + $0x10] sm:$0xff]
  %v151 = vld [vmem:[%s0 + $0x18] sm:$0xff]
  %v152 = vld [vmem:[%s0 + $0x20] sm:$0xff]
  %v153 = vld [vmem:[%s0 + $0x28] sm:$0xff]
  %v154 = vld [vmem:[%s0 + $0x30] sm:$0xff]
  %v155 = vld [vmem:[%s0 + $0x38] sm:$0xff]
  %v156 = vld [vmem:[%s0 + $0x40] sm:$0xff]
  %v157 = vld [vmem:[%s0 + $0x48] sm:$0xff]
  %v158 = vld [vmem:[%s0 + $0x50] sm:$0xff]
  %v159 = vld [vmem:[%s0 + $0x58] sm:$0xff]
  %v160 = vld [vmem:[%s0 + $0x60] sm:$0xff]
  %v161 = vld [vmem:[%s0 + $0x68] sm:$0xff]
  %v162 = vld [vmem:[%s0 + $0x70] sm:$0xff]
  %v163 = vld [vmem:[%s0 + $0x78] sm:$0xff]
  %v164 = vld [vmem:[%s0 + $0x80] sm:$0xff]
  %v165 = vld [vmem:[%s0 + $0x88] sm:$0xff]
  %v166 = vld [vmem:[%s0 + $0x90] sm:$0xff]
  %v167 = vld [vmem:[%s0 + $0x98] sm:$0xff]
  %v168 = vld [vmem:[%s0 + $0xa0] sm:$0xff]
  %v169 = vld [vmem:[%s0 + $0xa8] sm:$0xff]
  %v170 = vld [vmem:[%s0 + $0xb0] sm:$0xff]
  %v171 = vld [vmem:[%s0 + $0xb8] sm:$0xff]
  %v172 = vld [vmem:[%s0 + $0xc0] sm:$0xff]
  %v173 = vld [vmem:[%s0 + $0xc8] sm:$0xff]
  %v174 = vld [vmem:[%s0 + $0xd0] sm:$0xff]
  %v175 = vld [vmem:[%s0 + $0xd8] sm:$0xff]
  %v176 = vld [vmem:[%s0 + $0xe0] sm:$0xff]
  %v177 = vld [vmem:[%s0 + $0xe8] sm:$0xff]
  %v178 = vld [vmem:[%s0 + $0xf0] sm:$0xff]
  %v179 = vld [vmem:[%s0 + $0xf8] sm:$0xff]
  %v180 = vld [vmem:[%s0 + $0x100] sm:$0xff]
  %v181 = vld [vmem:[%s0 + $0x108] sm:$0xff]
  %v182 = vld [vmem:[%s0 + $0x110] sm:$0xff]
  %v183 = vld [vmem:[%s0 + $0x118] sm:$0xff]
  %v184 = vld [vmem:[%s0 + $0x120] sm:$0xff]
  %v185 = vld [vmem:[%s0 + $0x128] sm:$0xff]
  %v186 = vld [vmem:[%s0 + $0x130] sm:$0xff]
  %v187 = vld [vmem:[%s0 + $0x138] sm:$0xff]
  %v188 = vld [vmem:[%s0 + $0x140] sm:$0xff]
  %v189 = vld [vmem:[%s0 + $0x148] sm:$0xff]
  %v190 = vld [vmem:[%s0 + $0x150] sm:$0xff]
  %v191 = vld [vmem:[%s0 + $0x158] sm:$0xff]
  %v192 = vld [vmem:[%s0 + $0x160] sm:$0xff]
  %v193 = vld [vmem:[%s0 + $0x168] sm:$0xff]
  %v194 = vld [vmem:[%s0 + $0x170] sm:$0xff]
  %v195 = vld [vmem:[%s0 + $0x178] sm:$0xff]
  %v196 = vld [vmem:[%s0 + $0x180] sm:$0xff]
  %v197 = vld [vmem:[%s0 + $0x188] sm:$0xff]
  %v198 = vld [vmem:[%s0 + $0x190] sm:$0xff]
  %v199 = vld [vmem:[%s0 + $0x198] sm:$0xff]
  %v200 = vld [vmem:[%s0 + $0x1a0] sm:$0xff]
  %v201 = vld [vmem:[%s0 + $0x1a8] sm:$0xff]
  %v202 = vld [vmem:[%s0 + $0x1b0] sm:$0xff]
  %v203 = vld [vmem:[%s0 + $0x1b8] sm:$0xff]
  %v204 = vld [vmem:[%s0 + $0x1c0] sm:$0xff]
  %v205 = vld [vmem:[%s0 + $0x1c8] sm:$0xff]
  %v206 = vld [vmem:[%s0 + $0x1d0] sm:$0xff]
  %v207 = vld [vmem:[%s0 + $0x1d8] sm:$0xff]
  %v208 = vld [vmem:[%s0 + $0x1e0] sm:$0xff]
  %v209 = vld [vmem:[%s0 + $0x1e8] sm:$0xff]
  %v210 = vld [vmem:[%s0 + $0x1f0] sm:$0xff]
  %v211 = vld [vmem:[%s0 + $0x1f8] sm:$0xff]
  %v212 = vld [vmem:[%s1] sm:$0xf]
  %v213 = vld [vmem:[%s1 + $0x4] sm:$0xf]
  %v214 = vld [vmem:[%s1 + $0x8] sm:$0xf]
  %v215 = vld [vmem:[%s1 + $0xc] sm:$0xf]
  %v216 = vld [vmem:[%s1 + $0x10] sm:$0xf]
  %v217 = vld [vmem:[%s1 + $0x14] sm:$0xf]
  %v218 = vld [vmem:[%s1 + $0x18] sm:$0xf]
  %v219 = vld [vmem:[%s1 + $0x1c] sm:$0xf]
  %v220 = vld [vmem:[%s1 + $0x20] sm:$0xf]
  %v221 = vld [vmem:[%s1 + $0x24] sm:$0xf]
  %v222 = vld [vmem:[%s1 + $0x28] sm:$0xf]
  %v223 = vld [vmem:[%s1 + $0x2c] sm:$0xf]
  %v224 = vld [vmem:[%s1 + $0x30] sm:$0xf]
  %v225 = vld [vmem:[%s1 + $0x34] sm:$0xf]
  %v226 = vld [vmem:[%s1 + $0x38] sm:$0xf]
  %v227 = vld [vmem:[%s1 + $0x3c] sm:$0xf]
  %v228 = vld [vmem:[%s1 + $0x40] sm:$0xf]
  %v229 = vld [vmem:[%s1 + $0x44] sm:$0xf]
  %v294 = vunpack.c.l.b16 %v148
  %v295 = vunpack.c.h.b16 %v148
  %v296 = vunpack.c.l.b16 %v149
  %v297 = vunpack.c.h.b16 %v149
  %v298 = vunpack.c.l.b16 %v150
  %v299 = vunpack.c.h.b16 %v150
  %v300 = vunpack.c.l.b16 %v151
  %v301 = vunpack.c.h.b16 %v151
  %v302 = vunpack.c.l.b16 %v152
  %v303 = vunpack.c.h.b16 %v152
  %v304 = vunpack.c.l.b16 %v153
  %v305 = vunpack.c.h.b16 %v153
  %v306 = vunpack.c.l.b16 %v154
  %v307 = vunpack.c.h.b16 %v154
  %v308 = vunpack.c.l.b16 %v155
  %v309 = vunpack.c.h.b16 %v155
  %v310 = vunpack.c.l.b16 %v156
  %v311 = vunpack.c.h.b16 %v156
  %v312 = vunpack.c.l.b16 %v157
  %v313 = vunpack.c.h.b16 %v157
  %v314 = vunpack.c.l.b16 %v158
  %v315 = vunpack.c.h.b16 %v158
  %v316 = vunpack.c.l.b16 %v159
  %v317 = vunpack.c.h.b16 %v159
  %v318 = vunpack.c.l.b16 %v160
  %v319 = vunpack.c.h.b16 %v160
  %v320 = vunpack.c.l.b16 %v161
  %v321 = vunpack.c.h.b16 %v161
  %v322 = vunpack.c.l.b16 %v162
  %v323 = vunpack.c.h.b16 %v162
  %v324 = vunpack.c.l.b16 %v163
  %v325 = vunpack.c.h.b16 %v163
  %v326 = vunpack.c.l.b16 %v164
  %v327 = vunpack.c.h.b16 %v164
  %v328 = vunpack.c.l.b16 %v165
  %v329 = vunpack.c.h.b16 %v165
  %v330 = vunpack.c.l.b16 %v166
  %v331 = vunpack.c.h.b16 %v166
  %v332 = vunpack.c.l.b16 %v167
  %v333 = vunpack.c.h.b16 %v167
  %v334 = vunpack.c.l.b16 %v168
  %v335 = vunpack.c.h.b16 %v168
  %v336 = vunpack.c.l.b16 %v169
  %v337 = vunpack.c.h.b16 %v169
  %v338 = vunpack.c.l.b16 %v170
  %v339 = vunpack.c.h.b16 %v170
  %v340 = vunpack.c.l.b16 %v171
  %v341 = vunpack.c.h.b16 %v171
  %v342 = vunpack.c.l.b16 %v172
  %v343 = vunpack.c.h.b16 %v172
  %v344 = vunpack.c.l.b16 %v173
  %v345 = vunpack.c.h.b16 %v173
  %v346 = vunpack.c.l.b16 %v174
  %v347 = vunpack.c.h.b16 %v174
  %v348 = vunpack.c.l.b16 %v175
  %v349 = vunpack.c.h.b16 %v175
  %v350 = vunpack.c.l.b16 %v176
  %v351 = vunpack.c.h.b16 %v176
  %v352 = vunpack.c.l.b16 %v177
  %v353 = vunpack.c.h.b16 %v177
  %v354 = vunpack.c.l.b16 %v178
  %v355 = vunpack.c.h.b16 %v178
  %v356 = vunpack.c.l.b16 %v179
  %v357 = vunpack.c.h.b16 %v179
  %v358 = vunpack.c.l.b16 %v180
  %v359 = vunpack.c.h.b16 %v180
  %v360 = vunpack.c.l.b16 %v181
  %v361 = vunpack.c.h.b16 %v181
  %v362 = vunpack.c.l.b16 %v182
  %v363 = vunpack.c.h.b16 %v182
  %v364 = vunpack.c.l.b16 %v183
  %v365 = vunpack.c.h.b16 %v183
  %v366 = vunpack.c.l.b16 %v184
  %v367 = vunpack.c.h.b16 %v184
  %v368 = vunpack.c.l.b16 %v185
  %v369 = vunpack.c.h.b16 %v185
  %v370 = vunpack.c.l.b16 %v186
  %v371 = vunpack.c.h.b16 %v186
  %v372 = vunpack.c.l.b16 %v187
  %v373 = vunpack.c.h.b16 %v187
  %v374 = vunpack.c.l.b16 %v188
  %v375 = vunpack.c.h.b16 %v188
  %v376 = vunpack.c.l.b16 %v189
  %v377 = vunpack.c.h.b16 %v189
  %v378 = vunpack.c.l.b16 %v190
  %v379 = vunpack.c.h.b16 %v190
  %v380 = vunpack.c.l.b16 %v191
  %v381 = vunpack.c.h.b16 %v191
  %v382 = vunpack.c.l.b16 %v192
  %v383 = vunpack.c.h.b16 %v192
  %v384 = vunpack.c.l.b16 %v193
  %v385 = vunpack.c.h.b16 %v193
  %v386 = vunpack.c.l.b16 %v194
  %v387 = vunpack.c.h.b16 %v194
  %v388 = vunpack.c.l.b16 %v195
  %v389 = vunpack.c.h.b16 %v195
  %v390 = vunpack.c.l.b16 %v196
  %v391 = vunpack.c.h.b16 %v196
  %v392 = vunpack.c.l.b16 %v197
  %v393 = vunpack.c.h.b16 %v197
  %v394 = vunpack.c.l.b16 %v198
  %v395 = vunpack.c.h.b16 %v198
  %v396 = vunpack.c.l.b16 %v199
  %v397 = vunpack.c.h.b16 %v199
  %v398 = vunpack.c.l.b16 %v200
  %v399 = vunpack.c.h.b16 %v200
  %v400 = vunpack.c.l.b16 %v201
  %v401 = vunpack.c.h.b16 %v201
  %v402 = vunpack.c.l.b16 %v202
  %v403 = vunpack.c.h.b16 %v202
  %v404 = vunpack.c.l.b16 %v203
  %v405 = vunpack.c.h.b16 %v203
  %v406 = vunpack.c.l.b16 %v204
  %v407 = vunpack.c.h.b16 %v204
  %v408 = vunpack.c.l.b16 %v205
  %v409 = vunpack.c.h.b16 %v205
  %v410 = vunpack.c.l.b16 %v206
  %v411 = vunpack.c.h.b16 %v206
  %v412 = vunpack.c.l.b16 %v207
  %v413 = vunpack.c.h.b16 %v207
  %v414 = vunpack.c.l.b16 %v208
  %v415 = vunpack.c.h.b16 %v208
  %v416 = vunpack.c.l.b16 %v209
  %v417 = vunpack.c.h.b16 %v209
  %v418 = vunpack.c.l.b16 %v210
  %v419 = vunpack.c.h.b16 %v210
  %v420 = vunpack.c.l.b16 %v211
  %v421 = vunpack.c.h.b16 %v211
  %v422 = vpack.c.b16 %v296, %v294
  %v423 = vpack.c.b16 %v297, %v295
  %v424 = vpack.c.b16 %v300, %v298
  %v425 = vpack.c.b16 %v301, %v299
  %v426 = vpack.c.b16 %v304, %v302
  %v427 = vpack.c.b16 %v305, %v303
  %v428 = vpack.c.b16 %v308, %v306
  %v429 = vpack.c.b16 %v309, %v307
  %v430 = vpack.c.b16 %v312, %v310
  %v431 = vpack.c.b16 %v313, %v311
  %v432 = vpack.c.b16 %v316, %v314
  %v433 = vpack.c.b16 %v317, %v315
  %v434 = vpack.c.b16 %v320, %v318
  %v435 = vpack.c.b16 %v321, %v319
  %v436 = vpack.c.b16 %v324, %v322
  %v437 = vpack.c.b16 %v325, %v323
  %v438 = vpack.c.b16 %v328, %v326
  %v439 = vpack.c.b16 %v329, %v327
  %v440 = vpack.c.b16 %v332, %v330
  %v441 = vpack.c.b16 %v333, %v331
  %v442 = vpack.c.b16 %v336, %v334
  %v443 = vpack.c.b16 %v337, %v335
  %v444 = vpack.c.b16 %v340, %v338
  %v445 = vpack.c.b16 %v341, %v339
  %v446 = vpack.c.b16 %v344, %v342
  %v447 = vpack.c.b16 %v345, %v343
  %v448 = vpack.c.b16 %v348, %v346
  %v449 = vpack.c.b16 %v349, %v347
  %v450 = vpack.c.b16 %v352, %v350
  %v451 = vpack.c.b16 %v353, %v351
  %v452 = vpack.c.b16 %v356, %v354
  %v453 = vpack.c.b16 %v357, %v355
  %v454 = vpack.c.b16 %v360, %v358
  %v455 = vpack.c.b16 %v361, %v359
  %v456 = vpack.c.b16 %v364, %v362
  %v457 = vpack.c.b16 %v365, %v363
  %v458 = vpack.c.b16 %v368, %v366
  %v459 = vpack.c.b16 %v369, %v367
  %v460 = vpack.c.b16 %v372, %v370
  %v461 = vpack.c.b16 %v373, %v371
  %v462 = vpack.c.b16 %v376, %v374
  %v463 = vpack.c.b16 %v377, %v375
  %v464 = vpack.c.b16 %v380, %v378
  %v465 = vpack.c.b16 %v381, %v379
  %v466 = vpack.c.b16 %v384, %v382
  %v467 = vpack.c.b16 %v385, %v383
  %v468 = vpack.c.b16 %v388, %v386
  %v469 = vpack.c.b16 %v389, %v387
  %v470 = vpack.c.b16 %v392, %v390
  %v471 = vpack.c.b16 %v393, %v391
  %v472 = vpack.c.b16 %v396, %v394
  %v473 = vpack.c.b16 %v397, %v395
  %v474 = vpack.c.b16 %v400, %v398
  %v475 = vpack.c.b16 %v401, %v399
  %v476 = vpack.c.b16 %v404, %v402
  %v477 = vpack.c.b16 %v405, %v403
  %v478 = vpack.c.b16 %v408, %v406
  %v479 = vpack.c.b16 %v409, %v407
  %v480 = vpack.c.b16 %v412, %v410
  %v481 = vpack.c.b16 %v413, %v411
  %v482 = vpack.c.b16 %v416, %v414
  %v483 = vpack.c.b16 %v417, %v415
  %v484 = vpack.c.b16 %v420, %v418
  %v485 = vpack.c.b16 %v421, %v419
  %v536 = vunpack.c.l.b16 %v212
  %v537 = vunpack.c.l.b16 %v213
  %v538 = vunpack.c.l.b16 %v214
  %v539 = vunpack.c.l.b16 %v215
  %v540 = vunpack.c.l.b16 %v216
  %v541 = vunpack.c.l.b16 %v217
  %v542 = vunpack.c.l.b16 %v218
  %v543 = vunpack.c.l.b16 %v219
  %v544 = vunpack.c.l.b16 %v220
  %v545 = vunpack.c.l.b16 %v221
  %v546 = vunpack.c.l.b16 %v222
  %v547 = vunpack.c.l.b16 %v223
  %v548 = vunpack.c.l.b16 %v224
  %v549 = vunpack.c.l.b16 %v225
  %v550 = vunpack.c.l.b16 %v226
  %v551 = vunpack.c.l.b16 %v227
  %v552 = vunpack.c.l.b16 %v228
  %v553 = vunpack.c.l.b16 %v229
  %v554 = vpack.c.b16 %v537, %v536
  %v555 = vpack.c.b16 %v539, %v538
  %v556 = vpack.c.b16 %v541, %v540
  %v557 = vpack.c.b16 %v543, %v542
  %v558 = vpack.c.b16 %v545, %v544
  %v559 = vpack.c.b16 %v547, %v546
  %v560 = vpack.c.b16 %v549, %v548
  %v561 = vpack.c.b16 %v551, %v550
  %v562 = vpack.c.b16 %v553, %v552
  %vm572 = vcmask 130048
  %v574 = vsel %vm572, %v423, 0
  %v577 = vsel %vm572, %v425, 0
  %v580 = vsel %vm572, %v427, 0
  %v583 = vsel %vm572, %v429, 0
  %v586 = vsel %vm572, %v431, 0
  %v589 = vsel %vm572, %v433, 0
  %v592 = vsel %vm572, %v435, 0
  %v595 = vsel %vm572, %v437, 0
  %v598 = vsel %vm572, %v439, 0
  %v601 = vsel %vm572, %v441, 0
  %v604 = vsel %vm572, %v443, 0
  %v607 = vsel %vm572, %v445, 0
  %v610 = vsel %vm572, %v447, 0
  %v613 = vsel %vm572, %v449, 0
  %v616 = vsel %vm572, %v451, 0
  %v619 = vsel %vm572, %v453, 0
  %v622 = vsel %vm572, %v455, 0
  %v625 = vsel %vm572, %v457, 0
  %v628 = vsel %vm572, %v459, 0
  %v631 = vsel %vm572, %v461, 0
  %v634 = vsel %vm572, %v463, 0
  %v637 = vsel %vm572, %v465, 0
  %v640 = vsel %vm572, %v467, 0
  %v643 = vsel %vm572, %v469, 0
  %v646 = vsel %vm572, %v471, 0
  %v649 = vsel %vm572, %v473, 0
  %v652 = vsel %vm572, %v475, 0
  %v655 = vsel %vm572, %v477, 0
  %v658 = vsel %vm572, %v479, 0
  %v661 = vsel %vm572, %v481, 0
  %v664 = vsel %vm572, %v483, 0
  %v667 = vsel %vm572, %v485, 0
  %669 = vmatpush.bf16.msra.mxu0 %v561
  %670 = vmatpush.bf16.msra.mxu0 %v560
  %671 = vmatpush.bf16.msra.mxu0 %v559
  %672 = vmatpush.bf16.msra.mxu0 %v558
  %673 = vmatpush.bf16.msra.mxu0 %v557
  %674 = vmatpush.bf16.msra.mxu0 %v556
  %675 = vmatpush.bf16.msra.mxu0 %v555
  %676 = vmatpush.bf16.msra.mxu0 %v554
  %677 = vmatmul.bf16.gmra.mxu0 %v422
  %v678 = vpop.f32.mrf.mxu0
  %v679 = vadd.f32 0.0, %v678
  %v680 = vpop.f32.mrf.mxu0
  %v681 = vadd.f32 0.0, %v680
  %682 = vmatmul.bf16.gmra.mxu0 %v424
  %v683 = vpop.f32.mrf.mxu0
  %v684 = vadd.f32 0.0, %v683
  %v685 = vpop.f32.mrf.mxu0
  %v686 = vadd.f32 0.0, %v685
  %687 = vmatmul.bf16.gmra.mxu0 %v426
  %v688 = vpop.f32.mrf.mxu0
  %v689 = vadd.f32 0.0, %v688
  %v690 = vpop.f32.mrf.mxu0
  %v691 = vadd.f32 0.0, %v690
  %692 = vmatmul.bf16.gmra.mxu0 %v428
  %v693 = vpop.f32.mrf.mxu0
  %v694 = vadd.f32 0.0, %v693
  %v695 = vpop.f32.mrf.mxu0
  %v696 = vadd.f32 0.0, %v695
  %697 = vmatmul.bf16.gmra.mxu0 %v430
  %v698 = vpop.f32.mrf.mxu0
  %v699 = vadd.f32 0.0, %v698
  %v700 = vpop.f32.mrf.mxu0
  %v701 = vadd.f32 0.0, %v700
  %702 = vmatmul.bf16.gmra.mxu0 %v432
  %v703 = vpop.f32.mrf.mxu0
  %v704 = vadd.f32 0.0, %v703
  %v705 = vpop.f32.mrf.mxu0
  %v706 = vadd.f32 0.0, %v705
  %707 = vmatmul.bf16.gmra.mxu0 %v434
  %v708 = vpop.f32.mrf.mxu0
  %v709 = vadd.f32 0.0, %v708
  %v710 = vpop.f32.mrf.mxu0
  %v711 = vadd.f32 0.0, %v710
  %712 = vmatmul.bf16.gmra.mxu0 %v436
  %v713 = vpop.f32.mrf.mxu0
  %v714 = vadd.f32 0.0, %v713
  %v715 = vpop.f32.mrf.mxu0
  %v716 = vadd.f32 0.0, %v715
  %717 = vmatmul.bf16.gmra.mxu0 %v438
  %v718 = vpop.f32.mrf.mxu0
  %v719 = vadd.f32 0.0, %v718
  %v720 = vpop.f32.mrf.mxu0
  %v721 = vadd.f32 0.0, %v720
  %722 = vmatmul.bf16.gmra.mxu0 %v440
  %v723 = vpop.f32.mrf.mxu0
  %v724 = vadd.f32 0.0, %v723
  %v725 = vpop.f32.mrf.mxu0
  %v726 = vadd.f32 0.0, %v725
  %727 = vmatmul.bf16.gmra.mxu0 %v442
  %v728 = vpop.f32.mrf.mxu0
  %v729 = vadd.f32 0.0, %v728
  %v730 = vpop.f32.mrf.mxu0
  %v731 = vadd.f32 0.0, %v730
  %732 = vmatmul.bf16.gmra.mxu0 %v444
  %v733 = vpop.f32.mrf.mxu0
  %v734 = vadd.f32 0.0, %v733
  %v735 = vpop.f32.mrf.mxu0
  %v736 = vadd.f32 0.0, %v735
  %737 = vmatmul.bf16.gmra.mxu0 %v446
  %v738 = vpop.f32.mrf.mxu0
  %v739 = vadd.f32 0.0, %v738
  %v740 = vpop.f32.mrf.mxu0
  %v741 = vadd.f32 0.0, %v740
  %742 = vmatmul.bf16.gmra.mxu0 %v448
  %v743 = vpop.f32.mrf.mxu0
  %v744 = vadd.f32 0.0, %v743
  %v745 = vpop.f32.mrf.mxu0
  %v746 = vadd.f32 0.0, %v745
  %747 = vmatmul.bf16.gmra.mxu0 %v450
  %v748 = vpop.f32.mrf.mxu0
  %v749 = vadd.f32 0.0, %v748
  %v750 = vpop.f32.mrf.mxu0
  %v751 = vadd.f32 0.0, %v750
  %752 = vmatmul.bf16.gmra.mxu0 %v452
  %v753 = vpop.f32.mrf.mxu0
  %v754 = vadd.f32 0.0, %v753
  %v755 = vpop.f32.mrf.mxu0
  %v756 = vadd.f32 0.0, %v755
  %757 = vmatmul.bf16.gmra.mxu0 %v454
  %v758 = vpop.f32.mrf.mxu0
  %v759 = vadd.f32 0.0, %v758
  %v760 = vpop.f32.mrf.mxu0
  %v761 = vadd.f32 0.0, %v760
  %762 = vmatmul.bf16.gmra.mxu0 %v456
  %v763 = vpop.f32.mrf.mxu0
  %v764 = vadd.f32 0.0, %v763
  %v765 = vpop.f32.mrf.mxu0
  %v766 = vadd.f32 0.0, %v765
  %767 = vmatmul.bf16.gmra.mxu0 %v458
  %v768 = vpop.f32.mrf.mxu0
  %v769 = vadd.f32 0.0, %v768
  %v770 = vpop.f32.mrf.mxu0
  %v771 = vadd.f32 0.0, %v770
  %772 = vmatmul.bf16.gmra.mxu0 %v460
  %v773 = vpop.f32.mrf.mxu0
  %v774 = vadd.f32 0.0, %v773
  %v775 = vpop.f32.mrf.mxu0
  %v776 = vadd.f32 0.0, %v775
  %777 = vmatmul.bf16.gmra.mxu0 %v462
  %v778 = vpop.f32.mrf.mxu0
  %v779 = vadd.f32 0.0, %v778
  %v780 = vpop.f32.mrf.mxu0
  %v781 = vadd.f32 0.0, %v780
  %782 = vmatmul.bf16.gmra.mxu0 %v464
  %v783 = vpop.f32.mrf.mxu0
  %v784 = vadd.f32 0.0, %v783
  %v785 = vpop.f32.mrf.mxu0
  %v786 = vadd.f32 0.0, %v785
  %787 = vmatmul.bf16.gmra.mxu0 %v466
  %v788 = vpop.f32.mrf.mxu0
  %v789 = vadd.f32 0.0, %v788
  %v790 = vpop.f32.mrf.mxu0
  %v791 = vadd.f32 0.0, %v790
  %792 = vmatmul.bf16.gmra.mxu0 %v468
  %v793 = vpop.f32.mrf.mxu0
  %v794 = vadd.f32 0.0, %v793
  %v795 = vpop.f32.mrf.mxu0
  %v796 = vadd.f32 0.0, %v795
  %797 = vmatmul.bf16.gmra.mxu0 %v470
  %v798 = vpop.f32.mrf.mxu0
  %v799 = vadd.f32 0.0, %v798
  %v800 = vpop.f32.mrf.mxu0
  %v801 = vadd.f32 0.0, %v800
  %802 = vmatmul.bf16.gmra.mxu0 %v472
  %v803 = vpop.f32.mrf.mxu0
  %v804 = vadd.f32 0.0, %v803
  %v805 = vpop.f32.mrf.mxu0
  %v806 = vadd.f32 0.0, %v805
  %807 = vmatmul.bf16.gmra.mxu0 %v474
  %v808 = vpop.f32.mrf.mxu0
  %v809 = vadd.f32 0.0, %v808
  %v810 = vpop.f32.mrf.mxu0
  %v811 = vadd.f32 0.0, %v810
  %812 = vmatmul.bf16.gmra.mxu0 %v476
  %v813 = vpop.f32.mrf.mxu0
  %v814 = vadd.f32 0.0, %v813
  %v815 = vpop.f32.mrf.mxu0
  %v816 = vadd.f32 0.0, %v815
  %817 = vmatmul.bf16.gmra.mxu0 %v478
  %v818 = vpop.f32.mrf.mxu0
  %v819 = vadd.f32 0.0, %v818
  %v820 = vpop.f32.mrf.mxu0
  %v821 = vadd.f32 0.0, %v820
  %822 = vmatmul.bf16.gmra.mxu0 %v480
  %v823 = vpop.f32.mrf.mxu0
  %v824 = vadd.f32 0.0, %v823
  %v825 = vpop.f32.mrf.mxu0
  %v826 = vadd.f32 0.0, %v825
  %827 = vmatmul.bf16.gmra.mxu0 %v482
  %v828 = vpop.f32.mrf.mxu0
  %v829 = vadd.f32 0.0, %v828
  %v830 = vpop.f32.mrf.mxu0
  %v831 = vadd.f32 0.0, %v830
  %832 = vmatmul.bf16.gmra.mxu0 %v484
  %v833 = vpop.f32.mrf.mxu0
  %v834 = vadd.f32 0.0, %v833
  %v835 = vpop.f32.mrf.mxu0
  %v836 = vadd.f32 0.0, %v835
  %837 = vdwg.mxu0
  %838 = vmatpush.bf16.msra.mxu0 0
  %839 = vmatpush.bf16.msra.mxu0 0
  %840 = vmatpush.bf16.msra.mxu0 0
  %841 = vmatpush.bf16.msra.mxu0 0
  %842 = vmatpush.bf16.msra.mxu0 0
  %843 = vmatpush.bf16.msra.mxu0 0
  %844 = vmatpush.bf16.msra.mxu0 0
  %845 = vmatpush.bf16.msra.mxu0 %v562
  %846 = vmatmul.bf16.gmra.mxu0 %v574
  %v847 = vpop.f32.mrf.mxu0
  %v848 = vadd.f32 %v679, %v847
  %v849 = vpop.f32.mrf.mxu0
  %v850 = vadd.f32 %v681, %v849
  %851 = vmatmul.bf16.gmra.mxu0 %v577
  %v852 = vpop.f32.mrf.mxu0
  %v853 = vadd.f32 %v684, %v852
  %v854 = vpop.f32.mrf.mxu0
  %v855 = vadd.f32 %v686, %v854
  %856 = vmatmul.bf16.gmra.mxu0 %v580
  %v857 = vpop.f32.mrf.mxu0
  %v858 = vadd.f32 %v689, %v857
  %v859 = vpop.f32.mrf.mxu0
  %v860 = vadd.f32 %v691, %v859
  %861 = vmatmul.bf16.gmra.mxu0 %v583
  %v862 = vpop.f32.mrf.mxu0
  %v863 = vadd.f32 %v694, %v862
  %v864 = vpop.f32.mrf.mxu0
  %v865 = vadd.f32 %v696, %v864
  %866 = vmatmul.bf16.gmra.mxu0 %v586
  %v867 = vpop.f32.mrf.mxu0
  %v868 = vadd.f32 %v699, %v867
  %v869 = vpop.f32.mrf.mxu0
  %v870 = vadd.f32 %v701, %v869
  %871 = vmatmul.bf16.gmra.mxu0 %v589
  %v872 = vpop.f32.mrf.mxu0
  %v873 = vadd.f32 %v704, %v872
  %v874 = vpop.f32.mrf.mxu0
  %v875 = vadd.f32 %v706, %v874
  %876 = vmatmul.bf16.gmra.mxu0 %v592
  %v877 = vpop.f32.mrf.mxu0
  %v878 = vadd.f32 %v709, %v877
  %v879 = vpop.f32.mrf.mxu0
  %v880 = vadd.f32 %v711, %v879
  %881 = vmatmul.bf16.gmra.mxu0 %v595
  %v882 = vpop.f32.mrf.mxu0
  %v883 = vadd.f32 %v714, %v882
  %v884 = vpop.f32.mrf.mxu0
  %v885 = vadd.f32 %v716, %v884
  %886 = vmatmul.bf16.gmra.mxu0 %v598
  %v887 = vpop.f32.mrf.mxu0
  %v888 = vadd.f32 %v719, %v887
  %v889 = vpop.f32.mrf.mxu0
  %v890 = vadd.f32 %v721, %v889
  %891 = vmatmul.bf16.gmra.mxu0 %v601
  %v892 = vpop.f32.mrf.mxu0
  %v893 = vadd.f32 %v724, %v892
  %v894 = vpop.f32.mrf.mxu0
  %v895 = vadd.f32 %v726, %v894
  %896 = vmatmul.bf16.gmra.mxu0 %v604
  %v897 = vpop.f32.mrf.mxu0
  %v898 = vadd.f32 %v729, %v897
  %v899 = vpop.f32.mrf.mxu0
  %v900 = vadd.f32 %v731, %v899
  %901 = vmatmul.bf16.gmra.mxu0 %v607
  %v902 = vpop.f32.mrf.mxu0
  %v903 = vadd.f32 %v734, %v902
  %v904 = vpop.f32.mrf.mxu0
  %v905 = vadd.f32 %v736, %v904
  %906 = vmatmul.bf16.gmra.mxu0 %v610
  %v907 = vpop.f32.mrf.mxu0
  %v908 = vadd.f32 %v739, %v907
  %v909 = vpop.f32.mrf.mxu0
  %v910 = vadd.f32 %v741, %v909
  %911 = vmatmul.bf16.gmra.mxu0 %v613
  %v912 = vpop.f32.mrf.mxu0
  %v913 = vadd.f32 %v744, %v912
  %v914 = vpop.f32.mrf.mxu0
  %v915 = vadd.f32 %v746, %v914
  %916 = vmatmul.bf16.gmra.mxu0 %v616
  %v917 = vpop.f32.mrf.mxu0
  %v918 = vadd.f32 %v749, %v917
  %v919 = vpop.f32.mrf.mxu0
  %v920 = vadd.f32 %v751, %v919
  %921 = vmatmul.bf16.gmra.mxu0 %v619
  %v922 = vpop.f32.mrf.mxu0
  %v923 = vadd.f32 %v754, %v922
  %v924 = vpop.f32.mrf.mxu0
  %v925 = vadd.f32 %v756, %v924
  %926 = vmatmul.bf16.gmra.mxu0 %v622
  %v927 = vpop.f32.mrf.mxu0
  %v928 = vadd.f32 %v759, %v927
  %v929 = vpop.f32.mrf.mxu0
  %v930 = vadd.f32 %v761, %v929
  %931 = vmatmul.bf16.gmra.mxu0 %v625
  %v932 = vpop.f32.mrf.mxu0
  %v933 = vadd.f32 %v764, %v932
  %v934 = vpop.f32.mrf.mxu0
  %v935 = vadd.f32 %v766, %v934
  %936 = vmatmul.bf16.gmra.mxu0 %v628
  %v937 = vpop.f32.mrf.mxu0
  %v938 = vadd.f32 %v769, %v937
  %v939 = vpop.f32.mrf.mxu0
  %v940 = vadd.f32 %v771, %v939
  %941 = vmatmul.bf16.gmra.mxu0 %v631
  %v942 = vpop.f32.mrf.mxu0
  %v943 = vadd.f32 %v774, %v942
  %v944 = vpop.f32.mrf.mxu0
  %v945 = vadd.f32 %v776, %v944
  %946 = vmatmul.bf16.gmra.mxu0 %v634
  %v947 = vpop.f32.mrf.mxu0
  %v948 = vadd.f32 %v779, %v947
  %v949 = vpop.f32.mrf.mxu0
  %v950 = vadd.f32 %v781, %v949
  %951 = vmatmul.bf16.gmra.mxu0 %v637
  %v952 = vpop.f32.mrf.mxu0
  %v953 = vadd.f32 %v784, %v952
  %v954 = vpop.f32.mrf.mxu0
  %v955 = vadd.f32 %v786, %v954
  %956 = vmatmul.bf16.gmra.mxu0 %v640
  %v957 = vpop.f32.mrf.mxu0
  %v958 = vadd.f32 %v789, %v957
  %v959 = vpop.f32.mrf.mxu0
  %v960 = vadd.f32 %v791, %v959
  %961 = vmatmul.bf16.gmra.mxu0 %v643
  %v962 = vpop.f32.mrf.mxu0
  %v963 = vadd.f32 %v794, %v962
  %v964 = vpop.f32.mrf.mxu0
  %v965 = vadd.f32 %v796, %v964
  %966 = vmatmul.bf16.gmra.mxu0 %v646
  %v967 = vpop.f32.mrf.mxu0
  %v968 = vadd.f32 %v799, %v967
  %v969 = vpop.f32.mrf.mxu0
  %v970 = vadd.f32 %v801, %v969
  %971 = vmatmul.bf16.gmra.mxu0 %v649
  %v972 = vpop.f32.mrf.mxu0
  %v973 = vadd.f32 %v804, %v972
  %v974 = vpop.f32.mrf.mxu0
  %v975 = vadd.f32 %v806, %v974
  %976 = vmatmul.bf16.gmra.mxu0 %v652
  %v977 = vpop.f32.mrf.mxu0
  %v978 = vadd.f32 %v809, %v977
  %v979 = vpop.f32.mrf.mxu0
  %v980 = vadd.f32 %v811, %v979
  %981 = vmatmul.bf16.gmra.mxu0 %v655
  %v982 = vpop.f32.mrf.mxu0
  %v983 = vadd.f32 %v814, %v982
  %v984 = vpop.f32.mrf.mxu0
  %v985 = vadd.f32 %v816, %v984
  %986 = vmatmul.bf16.gmra.mxu0 %v658
  %v987 = vpop.f32.mrf.mxu0
  %v988 = vadd.f32 %v819, %v987
  %v989 = vpop.f32.mrf.mxu0
  %v990 = vadd.f32 %v821, %v989
  %991 = vmatmul.bf16.gmra.mxu0 %v661
  %v992 = vpop.f32.mrf.mxu0
  %v993 = vadd.f32 %v824, %v992
  %v994 = vpop.f32.mrf.mxu0
  %v995 = vadd.f32 %v826, %v994
  %996 = vmatmul.bf16.gmra.mxu0 %v664
  %v997 = vpop.f32.mrf.mxu0
  %v998 = vadd.f32 %v829, %v997
  %v999 = vpop.f32.mrf.mxu0
  %v1000 = vadd.f32 %v831, %v999
  %1001 = vmatmul.bf16.gmra.mxu0 %v667
  %v1002 = vpop.f32.mrf.mxu0
  %v1003 = vadd.f32 %v834, %v1002
  %v1004 = vpop.f32.mrf.mxu0
  %v1005 = vadd.f32 %v836, %v1004
  %1006 = vdwg.mxu0
  %v1007 = vadd.f32 %v84, %v848
  %v1008 = vadd.f32 %v85, %v850
  %v1009 = vadd.f32 %v86, %v853
  %v1010 = vadd.f32 %v87, %v855
  %v1011 = vadd.f32 %v88, %v858
  %v1012 = vadd.f32 %v89, %v860
  %v1013 = vadd.f32 %v90, %v863
  %v1014 = vadd.f32 %v91, %v865
  %v1015 = vadd.f32 %v92, %v868
  %v1016 = vadd.f32 %v93, %v870
  %v1017 = vadd.f32 %v94, %v873
  %v1018 = vadd.f32 %v95, %v875
  %v1019 = vadd.f32 %v96, %v878
  %v1020 = vadd.f32 %v97, %v880
  %v1021 = vadd.f32 %v98, %v883
  %v1022 = vadd.f32 %v99, %v885
  %v1023 = vadd.f32 %v100, %v888
  %v1024 = vadd.f32 %v101, %v890
  %v1025 = vadd.f32 %v102, %v893
  %v1026 = vadd.f32 %v103, %v895
  %v1027 = vadd.f32 %v104, %v898
  %v1028 = vadd.f32 %v105, %v900
  %v1029 = vadd.f32 %v106, %v903
  %v1030 = vadd.f32 %v107, %v905
  %v1031 = vadd.f32 %v108, %v908
  %v1032 = vadd.f32 %v109, %v910
  %v1033 = vadd.f32 %v110, %v913
  %v1034 = vadd.f32 %v111, %v915
  %v1035 = vadd.f32 %v112, %v918
  %v1036 = vadd.f32 %v113, %v920
  %v1037 = vadd.f32 %v114, %v923
  %v1038 = vadd.f32 %v115, %v925
  %v1039 = vadd.f32 %v116, %v928
  %v1040 = vadd.f32 %v117, %v930
  %v1041 = vadd.f32 %v118, %v933
  %v1042 = vadd.f32 %v119, %v935
  %v1043 = vadd.f32 %v120, %v938
  %v1044 = vadd.f32 %v121, %v940
  %v1045 = vadd.f32 %v122, %v943
  %v1046 = vadd.f32 %v123, %v945
  %v1047 = vadd.f32 %v124, %v948
  %v1048 = vadd.f32 %v125, %v950
  %v1049 = vadd.f32 %v126, %v953
  %v1050 = vadd.f32 %v127, %v955
  %v1051 = vadd.f32 %v128, %v958
  %v1052 = vadd.f32 %v129, %v960
  %v1053 = vadd.f32 %v130, %v963
  %v1054 = vadd.f32 %v131, %v965
  %v1055 = vadd.f32 %v132, %v968
  %v1056 = vadd.f32 %v133, %v970
  %v1057 = vadd.f32 %v134, %v973
  %v1058 = vadd.f32 %v135, %v975
  %v1059 = vadd.f32 %v136, %v978
  %v1060 = vadd.f32 %v137, %v980
  %v1061 = vadd.f32 %v138, %v983
  %v1062 = vadd.f32 %v139, %v985
  %v1063 = vadd.f32 %v140, %v988
  %v1064 = vadd.f32 %v141, %v990
  %v1065 = vadd.f32 %v142, %v993
  %v1066 = vadd.f32 %v143, %v995
  %v1067 = vadd.f32 %v144, %v998
  %v1068 = vadd.f32 %v145, %v1000
  %v1069 = vadd.f32 %v146, %v1003
  %v1070 = vadd.f32 %v147, %v1005
  %vm1071 = vcmask 261120
  %1072 = vst.msk [vmem:[#allocation2] sm:$0xff] %vm1071, %v1007
  %1073 = vst.msk [vmem:[#allocation2 + $0x8] sm:$0xff] %vm1071, %v1008
  %1074 = vst.msk [vmem:[#allocation2 + $0x10] sm:$0xff] %vm1071, %v1009
  %1075 = vst.msk [vmem:[#allocation2 + $0x18] sm:$0xff] %vm1071, %v1010
  %1076 = vst.msk [vmem:[#allocation2 + $0x20] sm:$0xff] %vm1071, %v1011
  %1077 = vst.msk [vmem:[#allocation2 + $0x28] sm:$0xff] %vm1071, %v1012
  %1078 = vst.msk [vmem:[#allocation2 + $0x30] sm:$0xff] %vm1071, %v1013
  %1079 = vst.msk [vmem:[#allocation2 + $0x38] sm:$0xff] %vm1071, %v1014
  %1080 = vst.msk [vmem:[#allocation2 + $0x40] sm:$0xff] %vm1071, %v1015
  %1081 = vst.msk [vmem:[#allocation2 + $0x48] sm:$0xff] %vm1071, %v1016
  %1082 = vst.msk [vmem:[#allocation2 + $0x50] sm:$0xff] %vm1071, %v1017
  %1083 = vst.msk [vmem:[#allocation2 + $0x58] sm:$0xff] %vm1071, %v1018
  %1084 = vst.msk [vmem:[#allocation2 + $0x60] sm:$0xff] %vm1071, %v1019
  %1085 = vst.msk [vmem:[#allocation2 + $0x68] sm:$0xff] %vm1071, %v1020
  %1086 = vst.msk [vmem:[#allocation2 + $0x70] sm:$0xff] %vm1071, %v1021
  %1087 = vst.msk [vmem:[#allocation2 + $0x78] sm:$0xff] %vm1071, %v1022
  %1088 = vst.msk [vmem:[#allocation2 + $0x80] sm:$0xff] %vm1071, %v1023
  %1089 = vst.msk [vmem:[#allocation2 + $0x88] sm:$0xff] %vm1071, %v1024
  %1090 = vst.msk [vmem:[#allocation2 + $0x90] sm:$0xff] %vm1071, %v1025
  %1091 = vst.msk [vmem:[#allocation2 + $0x98] sm:$0xff] %vm1071, %v1026
  %1092 = vst.msk [vmem:[#allocation2 + $0xa0] sm:$0xff] %vm1071, %v1027
  %1093 = vst.msk [vmem:[#allocation2 + $0xa8] sm:$0xff] %vm1071, %v1028
  %1094 = vst.msk [vmem:[#allocation2 + $0xb0] sm:$0xff] %vm1071, %v1029
  %1095 = vst.msk [vmem:[#allocation2 + $0xb8] sm:$0xff] %vm1071, %v1030
  %1096 = vst.msk [vmem:[#allocation2 + $0xc0] sm:$0xff] %vm1071, %v1031
  %1097 = vst.msk [vmem:[#allocation2 + $0xc8] sm:$0xff] %vm1071, %v1032
  %1098 = vst.msk [vmem:[#allocation2 + $0xd0] sm:$0xff] %vm1071, %v1033
  %1099 = vst.msk [vmem:[#allocation2 + $0xd8] sm:$0xff] %vm1071, %v1034
  %1100 = vst.msk [vmem:[#allocation2 + $0xe0] sm:$0xff] %vm1071, %v1035
  %1101 = vst.msk [vmem:[#allocation2 + $0xe8] sm:$0xff] %vm1071, %v1036
  %1102 = vst.msk [vmem:[#allocation2 + $0xf0] sm:$0xff] %vm1071, %v1037
  %1103 = vst.msk [vmem:[#allocation2 + $0xf8] sm:$0xff] %vm1071, %v1038
  %1104 = vst.msk [vmem:[#allocation2 + $0x100] sm:$0xff] %vm1071, %v1039
  %1105 = vst.msk [vmem:[#allocation2 + $0x108] sm:$0xff] %vm1071, %v1040
  %1106 = vst.msk [vmem:[#allocation2 + $0x110] sm:$0xff] %vm1071, %v1041
  %1107 = vst.msk [vmem:[#allocation2 + $0x118] sm:$0xff] %vm1071, %v1042
  %1108 = vst.msk [vmem:[#allocation2 + $0x120] sm:$0xff] %vm1071, %v1043
  %1109 = vst.msk [vmem:[#allocation2 + $0x128] sm:$0xff] %vm1071, %v1044
  %1110 = vst.msk [vmem:[#allocation2 + $0x130] sm:$0xff] %vm1071, %v1045
  %1111 = vst.msk [vmem:[#allocation2 + $0x138] sm:$0xff] %vm1071, %v1046
  %1112 = vst.msk [vmem:[#allocation2 + $0x140] sm:$0xff] %vm1071, %v1047
  %1113 = vst.msk [vmem:[#allocation2 + $0x148] sm:$0xff] %vm1071, %v1048
  %1114 = vst.msk [vmem:[#allocation2 + $0x150] sm:$0xff] %vm1071, %v1049
  %1115 = vst.msk [vmem:[#allocation2 + $0x158] sm:$0xff] %vm1071, %v1050
  %1116 = vst.msk [vmem:[#allocation2 + $0x160] sm:$0xff] %vm1071, %v1051
  %1117 = vst.msk [vmem:[#allocation2 + $0x168] sm:$0xff] %vm1071, %v1052
  %1118 = vst.msk [vmem:[#allocation2 + $0x170] sm:$0xff] %vm1071, %v1053
  %1119 = vst.msk [vmem:[#allocation2 + $0x178] sm:$0xff] %vm1071, %v1054
  %1120 = vst.msk [vmem:[#allocation2 + $0x180] sm:$0xff] %vm1071, %v1055
  %1121 = vst.msk [vmem:[#allocation2 + $0x188] sm:$0xff] %vm1071, %v1056
  %1122 = vst.msk [vmem:[#allocation2 + $0x190] sm:$0xff] %vm1071, %v1057
  %1123 = vst.msk [vmem:[#allocation2 + $0x198] sm:$0xff] %vm1071, %v1058
  %1124 = vst.msk [vmem:[#allocation2 + $0x1a0] sm:$0xff] %vm1071, %v1059
  %1125 = vst.msk [vmem:[#allocation2 + $0x1a8] sm:$0xff] %vm1071, %v1060
  %1126 = vst.msk [vmem:[#allocation2 + $0x1b0] sm:$0xff] %vm1071, %v1061
  %1127 = vst.msk [vmem:[#allocation2 + $0x1b8] sm:$0xff] %vm1071, %v1062
  %1128 = vst.msk [vmem:[#allocation2 + $0x1c0] sm:$0xff] %vm1071, %v1063
  %1129 = vst.msk [vmem:[#allocation2 + $0x1c8] sm:$0xff] %vm1071, %v1064
  %1130 = vst.msk [vmem:[#allocation2 + $0x1d0] sm:$0xff] %vm1071, %v1065
  %1131 = vst.msk [vmem:[#allocation2 + $0x1d8] sm:$0xff] %vm1071, %v1066
  %1132 = vst.msk [vmem:[#allocation2 + $0x1e0] sm:$0xff] %vm1071, %v1067
  %1133 = vst.msk [vmem:[#allocation2 + $0x1e8] sm:$0xff] %vm1071, %v1068
  %1134 = vst.msk [vmem:[#allocation2 + $0x1f0] sm:$0xff] %vm1071, %v1069
  %1135 = vst.msk [vmem:[#allocation2 + $0x1f8] sm:$0xff] %vm1071, %v1070
  // Predicated region
  $region18: #{tpu_custom_call.1} parent=0 // pred_check
    %p1136 = pneg %p15
  $region19: #{tpu_custom_call.1} parent=0 // pred_check_branch
    %1138 = sbr.rel (%p1136) target = $region21
  $region20: #{tpu_custom_call.1} parent=0 // pred_region
    %v1139 = vld [vmem:[#allocation2] sm:$0xff]
    %v1140 = vld [vmem:[#allocation2 + $0x8] sm:$0xff]
    %v1141 = vld [vmem:[#allocation2 + $0x10] sm:$0xff]
    %v1142 = vld [vmem:[#allocation2 + $0x18] sm:$0xff]
    %v1143 = vld [vmem:[#allocation2 + $0x20] sm:$0xff]
    %v1144 = vld [vmem:[#allocation2 + $0x28] sm:$0xff]
    %v1145 = vld [vmem:[#allocation2 + $0x30] sm:$0xff]
    %v1146 = vld [vmem:[#allocation2 + $0x38] sm:$0xff]
    %v1147 = vld [vmem:[#allocation2 + $0x40] sm:$0xff]
    %v1148 = vld [vmem:[#allocation2 + $0x48] sm:$0xff]
    %v1149 = vld [vmem:[#allocation2 + $0x50] sm:$0xff]
    %v1150 = vld [vmem:[#allocation2 + $0x58] sm:$0xff]
    %v1151 = vld [vmem:[#allocation2 + $0x60] sm:$0xff]
    %v1152 = vld [vmem:[#allocation2 + $0x68] sm:$0xff]
    %v1153 = vld [vmem:[#allocation2 + $0x70] sm:$0xff]
    %v1154 = vld [vmem:[#allocation2 + $0x78] sm:$0xff]
    %v1155 = vld [vmem:[#allocation2 + $0x80] sm:$0xff]
    %v1156 = vld [vmem:[#allocation2 + $0x88] sm:$0xff]
    %v1157 = vld [vmem:[#allocation2 + $0x90] sm:$0xff]
    %v1158 = vld [vmem:[#allocation2 + $0x98] sm:$0xff]
    %v1159 = vld [vmem:[#allocation2 + $0xa0] sm:$0xff]
    %v1160 = vld [vmem:[#allocation2 + $0xa8] sm:$0xff]
    %v1161 = vld [vmem:[#allocation2 + $0xb0] sm:$0xff]
    %v1162 = vld [vmem:[#allocation2 + $0xb8] sm:$0xff]
    %v1163 = vld [vmem:[#allocation2 + $0xc0] sm:$0xff]
    %v1164 = vld [vmem:[#allocation2 + $0xc8] sm:$0xff]
    %v1165 = vld [vmem:[#allocation2 + $0xd0] sm:$0xff]
    %v1166 = vld [vmem:[#allocation2 + $0xd8] sm:$0xff]
    %v1167 = vld [vmem:[#allocation2 + $0xe0] sm:$0xff]
    %v1168 = vld [vmem:[#allocation2 + $0xe8] sm:$0xff]
    %v1169 = vld [vmem:[#allocation2 + $0xf0] sm:$0xff]
    %v1170 = vld [vmem:[#allocation2 + $0xf8] sm:$0xff]
    %v1171 = vld [vmem:[#allocation2 + $0x100] sm:$0xff]
    %v1172 = vld [vmem:[#allocation2 + $0x108] sm:$0xff]
    %v1173 = vld [vmem:[#allocation2 + $0x110] sm:$0xff]
    %v1174 = vld [vmem:[#allocation2 + $0x118] sm:$0xff]
    %v1175 = vld [vmem:[#allocation2 + $0x120] sm:$0xff]
    %v1176 = vld [vmem:[#allocation2 + $0x128] sm:$0xff]
    %v1177 = vld [vmem:[#allocation2 + $0x130] sm:$0xff]
    %v1178 = vld [vmem:[#allocation2 + $0x138] sm:$0xff]
    %v1179 = vld [vmem:[#allocation2 + $0x140] sm:$0xff]
    %v1180 = vld [vmem:[#allocation2 + $0x148] sm:$0xff]
    %v1181 = vld [vmem:[#allocation2 + $0x150] sm:$0xff]
    %v1182 = vld [vmem:[#allocation2 + $0x158] sm:$0xff]
    %v1183 = vld [vmem:[#allocation2 + $0x160] sm:$0xff]
    %v1184 = vld [vmem:[#allocation2 + $0x168] sm:$0xff]
    %v1185 = vld [vmem:[#allocation2 + $0x170] sm:$0xff]
    %v1186 = vld [vmem:[#allocation2 + $0x178] sm:$0xff]
    %v1187 = vld [vmem:[#allocation2 + $0x180] sm:$0xff]
    %v1188 = vld [vmem:[#allocation2 + $0x188] sm:$0xff]
    %v1189 = vld [vmem:[#allocation2 + $0x190] sm:$0xff]
    %v1190 = vld [vmem:[#allocation2 + $0x198] sm:$0xff]
    %v1191 = vld [vmem:[#allocation2 + $0x1a0] sm:$0xff]
    %v1192 = vld [vmem:[#allocation2 + $0x1a8] sm:$0xff]
    %v1193 = vld [vmem:[#allocation2 + $0x1b0] sm:$0xff]
    %v1194 = vld [vmem:[#allocation2 + $0x1b8] sm:$0xff]
    %v1195 = vld [vmem:[#allocation2 + $0x1c0] sm:$0xff]
    %v1196 = vld [vmem:[#allocation2 + $0x1c8] sm:$0xff]
    %v1197 = vld [vmem:[#allocation2 + $0x1d0] sm:$0xff]
    %v1198 = vld [vmem:[#allocation2 + $0x1d8] sm:$0xff]
    %v1199 = vld [vmem:[#allocation2 + $0x1e0] sm:$0xff]
    %v1200 = vld [vmem:[#allocation2 + $0x1e8] sm:$0xff]
    %v1201 = vld [vmem:[#allocation2 + $0x1f0] sm:$0xff]
    %v1202 = vld [vmem:[#allocation2 + $0x1f8] sm:$0xff]
    %v1203 = vld [vmem:[%s2] sm:$0x1]
    %v1205 = vperm.slane %v1203, 0
    %v1207 = vadd.f32 %v1139, %v1205
    %v1208 = vadd.f32 %v1140, %v1205
    %v1209 = vadd.f32 %v1141, %v1205
    %v1210 = vadd.f32 %v1142, %v1205
    %v1211 = vadd.f32 %v1143, %v1205
    %v1212 = vadd.f32 %v1144, %v1205
    %v1213 = vadd.f32 %v1145, %v1205
    %v1214 = vadd.f32 %v1146, %v1205
    %v1215 = vadd.f32 %v1147, %v1205
    %v1216 = vadd.f32 %v1148, %v1205
    %v1217 = vadd.f32 %v1149, %v1205
    %v1218 = vadd.f32 %v1150, %v1205
    %v1219 = vadd.f32 %v1151, %v1205
    %v1220 = vadd.f32 %v1152, %v1205
    %v1221 = vadd.f32 %v1153, %v1205
    %v1222 = vadd.f32 %v1154, %v1205
    %v1223 = vadd.f32 %v1155, %v1205
    %v1224 = vadd.f32 %v1156, %v1205
    %v1225 = vadd.f32 %v1157, %v1205
    %v1226 = vadd.f32 %v1158, %v1205
    %v1227 = vadd.f32 %v1159, %v1205
    %v1228 = vadd.f32 %v1160, %v1205
    %v1229 = vadd.f32 %v1161, %v1205
    %v1230 = vadd.f32 %v1162, %v1205
    %v1231 = vadd.f32 %v1163, %v1205
    %v1232 = vadd.f32 %v1164, %v1205
    %v1233 = vadd.f32 %v1165, %v1205
    %v1234 = vadd.f32 %v1166, %v1205
    %v1235 = vadd.f32 %v1167, %v1205
    %v1236 = vadd.f32 %v1168, %v1205
    %v1237 = vadd.f32 %v1169, %v1205
    %v1238 = vadd.f32 %v1170, %v1205
    %v1239 = vadd.f32 %v1171, %v1205
    %v1240 = vadd.f32 %v1172, %v1205
    %v1241 = vadd.f32 %v1173, %v1205
    %v1242 = vadd.f32 %v1174, %v1205
    %v1243 = vadd.f32 %v1175, %v1205
    %v1244 = vadd.f32 %v1176, %v1205
    %v1245 = vadd.f32 %v1177, %v1205
    %v1246 = vadd.f32 %v1178, %v1205
    %v1247 = vadd.f32 %v1179, %v1205
    %v1248 = vadd.f32 %v1180, %v1205
    %v1249 = vadd.f32 %v1181, %v1205
    %v1250 = vadd.f32 %v1182, %v1205
    %v1251 = vadd.f32 %v1183, %v1205
    %v1252 = vadd.f32 %v1184, %v1205
    %v1253 = vadd.f32 %v1185, %v1205
    %v1254 = vadd.f32 %v1186, %v1205
    %v1255 = vadd.f32 %v1187, %v1205
    %v1256 = vadd.f32 %v1188, %v1205
    %v1257 = vadd.f32 %v1189, %v1205
    %v1258 = vadd.f32 %v1190, %v1205
    %v1259 = vadd.f32 %v1191, %v1205
    %v1260 = vadd.f32 %v1192, %v1205
    %v1261 = vadd.f32 %v1193, %v1205
    %v1262 = vadd.f32 %v1194, %v1205
    %v1263 = vadd.f32 %v1195, %v1205
    %v1264 = vadd.f32 %v1196, %v1205
    %v1265 = vadd.f32 %v1197, %v1205
    %v1266 = vadd.f32 %v1198, %v1205
    %v1267 = vadd.f32 %v1199, %v1205
    %v1268 = vadd.f32 %v1200, %v1205
    %v1269 = vadd.f32 %v1201, %v1205
    %v1270 = vadd.f32 %v1202, %v1205
    %vm1271 = vcmp.ge.f32.partialorder %v1207, 0.0
    %vm1272 = vcmp.ge.f32.partialorder %v1208, 0.0
    %vm1273 = vcmp.ge.f32.partialorder %v1209, 0.0
    %vm1274 = vcmp.ge.f32.partialorder %v1210, 0.0
    %vm1275 = vcmp.ge.f32.partialorder %v1211, 0.0
    %vm1276 = vcmp.ge.f32.partialorder %v1212, 0.0
    %vm1277 = vcmp.ge.f32.partialorder %v1213, 0.0
    %vm1278 = vcmp.ge.f32.partialorder %v1214, 0.0
    %vm1279 = vcmp.ge.f32.partialorder %v1215, 0.0
    %vm1280 = vcmp.ge.f32.partialorder %v1216, 0.0
    %vm1281 = vcmp.ge.f32.partialorder %v1217, 0.0
    %vm1282 = vcmp.ge.f32.partialorder %v1218, 0.0
    %vm1283 = vcmp.ge.f32.partialorder %v1219, 0.0
    %vm1284 = vcmp.ge.f32.partialorder %v1220, 0.0
    %vm1285 = vcmp.ge.f32.partialorder %v1221, 0.0
    %vm1286 = vcmp.ge.f32.partialorder %v1222, 0.0
    %vm1287 = vcmp.ge.f32.partialorder %v1223, 0.0
    %vm1288 = vcmp.ge.f32.partialorder %v1224, 0.0
    %vm1289 = vcmp.ge.f32.partialorder %v1225, 0.0
    %vm1290 = vcmp.ge.f32.partialorder %v1226, 0.0
    %vm1291 = vcmp.ge.f32.partialorder %v1227, 0.0
    %vm1292 = vcmp.ge.f32.partialorder %v1228, 0.0
    %vm1293 = vcmp.ge.f32.partialorder %v1229, 0.0
    %vm1294 = vcmp.ge.f32.partialorder %v1230, 0.0
    %vm1295 = vcmp.ge.f32.partialorder %v1231, 0.0
    %vm1296 = vcmp.ge.f32.partialorder %v1232, 0.0
    %vm1297 = vcmp.ge.f32.partialorder %v1233, 0.0
    %vm1298 = vcmp.ge.f32.partialorder %v1234, 0.0
    %vm1299 = vcmp.ge.f32.partialorder %v1235, 0.0
    %vm1300 = vcmp.ge.f32.partialorder %v1236, 0.0
    %vm1301 = vcmp.ge.f32.partialorder %v1237, 0.0
    %vm1302 = vcmp.ge.f32.partialorder %v1238, 0.0
    %vm1303 = vcmp.ge.f32.partialorder %v1239, 0.0
    %vm1304 = vcmp.ge.f32.partialorder %v1240, 0.0
    %vm1305 = vcmp.ge.f32.partialorder %v1241, 0.0
    %vm1306 = vcmp.ge.f32.partialorder %v1242, 0.0
    %vm1307 = vcmp.ge.f32.partialorder %v1243, 0.0
    %vm1308 = vcmp.ge.f32.partialorder %v1244, 0.0
    %vm1309 = vcmp.ge.f32.partialorder %v1245, 0.0
    %vm1310 = vcmp.ge.f32.partialorder %v1246, 0.0
    %vm1311 = vcmp.ge.f32.partialorder %v1247, 0.0
    %vm1312 = vcmp.ge.f32.partialorder %v1248, 0.0
    %vm1313 = vcmp.ge.f32.partialorder %v1249, 0.0
    %vm1314 = vcmp.ge.f32.partialorder %v1250, 0.0
    %vm1315 = vcmp.ge.f32.partialorder %v1251, 0.0
    %vm1316 = vcmp.ge.f32.partialorder %v1252, 0.0
    %vm1317 = vcmp.ge.f32.partialorder %v1253, 0.0
    %vm1318 = vcmp.ge.f32.partialorder %v1254, 0.0
    %vm1319 = vcmp.ge.f32.partialorder %v1255, 0.0
    %vm1320 = vcmp.ge.f32.partialorder %v1256, 0.0
    %vm1321 = vcmp.ge.f32.partialorder %v1257, 0.0
    %vm1322 = vcmp.ge.f32.partialorder %v1258, 0.0
    %vm1323 = vcmp.ge.f32.partialorder %v1259, 0.0
    %vm1324 = vcmp.ge.f32.partialorder %v1260, 0.0
    %vm1325 = vcmp.ge.f32.partialorder %v1261, 0.0
    %vm1326 = vcmp.ge.f32.partialorder %v1262, 0.0
    %vm1327 = vcmp.ge.f32.partialorder %v1263, 0.0
    %vm1328 = vcmp.ge.f32.partialorder %v1264, 0.0
    %vm1329 = vcmp.ge.f32.partialorder %v1265, 0.0
    %vm1330 = vcmp.ge.f32.partialorder %v1266, 0.0
    %vm1331 = vcmp.ge.f32.partialorder %v1267, 0.0
    %vm1332 = vcmp.ge.f32.partialorder %v1268, 0.0
    %vm1333 = vcmp.ge.f32.partialorder %v1269, 0.0
    %vm1334 = vcmp.ge.f32.partialorder %v1270, 0.0
    %v1335 = vmul.f32 %v1207, 0.1
    %v1336 = vmul.f32 %v1208, 0.1
    %v1337 = vmul.f32 %v1209, 0.1
    %v1338 = vmul.f32 %v1210, 0.1
    %v1339 = vmul.f32 %v1211, 0.1
    %v1340 = vmul.f32 %v1212, 0.1
    %v1341 = vmul.f32 %v1213, 0.1
    %v1342 = vmul.f32 %v1214, 0.1
    %v1343 = vmul.f32 %v1215, 0.1
    %v1344 = vmul.f32 %v1216, 0.1
    %v1345 = vmul.f32 %v1217, 0.1
    %v1346 = vmul.f32 %v1218, 0.1
    %v1347 = vmul.f32 %v1219, 0.1
    %v1348 = vmul.f32 %v1220, 0.1
    %v1349 = vmul.f32 %v1221, 0.1
    %v1350 = vmul.f32 %v1222, 0.1
    %v1351 = vmul.f32 %v1223, 0.1
    %v1352 = vmul.f32 %v1224, 0.1
    %v1353 = vmul.f32 %v1225, 0.1
    %v1354 = vmul.f32 %v1226, 0.1
    %v1355 = vmul.f32 %v1227, 0.1
    %v1356 = vmul.f32 %v1228, 0.1
    %v1357 = vmul.f32 %v1229, 0.1
    %v1358 = vmul.f32 %v1230, 0.1
    %v1359 = vmul.f32 %v1231, 0.1
    %v1360 = vmul.f32 %v1232, 0.1
    %v1361 = vmul.f32 %v1233, 0.1
    %v1362 = vmul.f32 %v1234, 0.1
    %v1363 = vmul.f32 %v1235, 0.1
    %v1364 = vmul.f32 %v1236, 0.1
    %v1365 = vmul.f32 %v1237, 0.1
    %v1366 = vmul.f32 %v1238, 0.1
    %v1367 = vmul.f32 %v1239, 0.1
    %v1368 = vmul.f32 %v1240, 0.1
    %v1369 = vmul.f32 %v1241, 0.1
    %v1370 = vmul.f32 %v1242, 0.1
    %v1371 = vmul.f32 %v1243, 0.1
    %v1372 = vmul.f32 %v1244, 0.1
    %v1373 = vmul.f32 %v1245, 0.1
    %v1374 = vmul.f32 %v1246, 0.1
    %v1375 = vmul.f32 %v1247, 0.1
    %v1376 = vmul.f32 %v1248, 0.1
    %v1377 = vmul.f32 %v1249, 0.1
    %v1378 = vmul.f32 %v1250, 0.1
    %v1379 = vmul.f32 %v1251, 0.1
    %v1380 = vmul.f32 %v1252, 0.1
    %v1381 = vmul.f32 %v1253, 0.1
    %v1382 = vmul.f32 %v1254, 0.1
    %v1383 = vmul.f32 %v1255, 0.1
    %v1384 = vmul.f32 %v1256, 0.1
    %v1385 = vmul.f32 %v1257, 0.1
    %v1386 = vmul.f32 %v1258, 0.1
    %v1387 = vmul.f32 %v1259, 0.1
    %v1388 = vmul.f32 %v1260, 0.1
    %v1389 = vmul.f32 %v1261, 0.1
    %v1390 = vmul.f32 %v1262, 0.1
    %v1391 = vmul.f32 %v1263, 0.1
    %v1392 = vmul.f32 %v1264, 0.1
    %v1393 = vmul.f32 %v1265, 0.1
    %v1394 = vmul.f32 %v1266, 0.1
    %v1395 = vmul.f32 %v1267, 0.1
    %v1396 = vmul.f32 %v1268, 0.1
    %v1397 = vmul.f32 %v1269, 0.1
    %v1398 = vmul.f32 %v1270, 0.1
    %v1399 = vsel %vm1271, %v1207, %v1335
    %v1400 = vsel %vm1272, %v1208, %v1336
    %v1401 = vsel %vm1273, %v1209, %v1337
    %v1402 = vsel %vm1274, %v1210, %v1338
    %v1403 = vsel %vm1275, %v1211, %v1339
    %v1404 = vsel %vm1276, %v1212, %v1340
    %v1405 = vsel %vm1277, %v1213, %v1341
    %v1406 = vsel %vm1278, %v1214, %v1342
    %v1407 = vsel %vm1279, %v1215, %v1343
    %v1408 = vsel %vm1280, %v1216, %v1344
    %v1409 = vsel %vm1281, %v1217, %v1345
    %v1410 = vsel %vm1282, %v1218, %v1346
    %v1411 = vsel %vm1283, %v1219, %v1347
    %v1412 = vsel %vm1284, %v1220, %v1348
    %v1413 = vsel %vm1285, %v1221, %v1349
    %v1414 = vsel %vm1286, %v1222, %v1350
    %v1415 = vsel %vm1287, %v1223, %v1351
    %v1416 = vsel %vm1288, %v1224, %v1352
    %v1417 = vsel %vm1289, %v1225, %v1353
    %v1418 = vsel %vm1290, %v1226, %v1354
    %v1419 = vsel %vm1291, %v1227, %v1355
    %v1420 = vsel %vm1292, %v1228, %v1356
    %v1421 = vsel %vm1293, %v1229, %v1357
    %v1422 = vsel %vm1294, %v1230, %v1358
    %v1423 = vsel %vm1295, %v1231, %v1359
    %v1424 = vsel %vm1296, %v1232, %v1360
    %v1425 = vsel %vm1297, %v1233, %v1361
    %v1426 = vsel %vm1298, %v1234, %v1362
    %v1427 = vsel %vm1299, %v1235, %v1363
    %v1428 = vsel %vm1300, %v1236, %v1364
    %v1429 = vsel %vm1301, %v1237, %v1365
    %v1430 = vsel %vm1302, %v1238, %v1366
    %v1431 = vsel %vm1303, %v1239, %v1367
    %v1432 = vsel %vm1304, %v1240, %v1368
    %v1433 = vsel %vm1305, %v1241, %v1369
    %v1434 = vsel %vm1306, %v1242, %v1370
    %v1435 = vsel %vm1307, %v1243, %v1371
    %v1436 = vsel %vm1308, %v1244, %v1372
    %v1437 = vsel %vm1309, %v1245, %v1373
    %v1438 = vsel %vm1310, %v1246, %v1374
    %v1439 = vsel %vm1311, %v1247, %v1375
    %v1440 = vsel %vm1312, %v1248, %v1376
    %v1441 = vsel %vm1313, %v1249, %v1377
    %v1442 = vsel %vm1314, %v1250, %v1378
    %v1443 = vsel %vm1315, %v1251, %v1379
    %v1444 = vsel %vm1316, %v1252, %v1380
    %v1445 = vsel %vm1317, %v1253, %v1381
    %v1446 = vsel %vm1318, %v1254, %v1382
    %v1447 = vsel %vm1319, %v1255, %v1383
    %v1448 = vsel %vm1320, %v1256, %v1384
    %v1449 = vsel %vm1321, %v1257, %v1385
    %v1450 = vsel %vm1322, %v1258, %v1386
    %v1451 = vsel %vm1323, %v1259, %v1387
    %v1452 = vsel %vm1324, %v1260, %v1388
    %v1453 = vsel %vm1325, %v1261, %v1389
    %v1454 = vsel %vm1326, %v1262, %v1390
    %v1455 = vsel %vm1327, %v1263, %v1391
    %v1456 = vsel %vm1328, %v1264, %v1392
    %v1457 = vsel %vm1329, %v1265, %v1393
    %v1458 = vsel %vm1330, %v1266, %v1394
    %v1459 = vsel %vm1331, %v1267, %v1395
    %v1460 = vsel %vm1332, %v1268, %v1396
    %v1461 = vsel %vm1333, %v1269, %v1397
    %v1462 = vsel %vm1334, %v1270, %v1398
    %v1463 = vpack.c.bf16 %v1399, %v1399
    %v1464 = vpack.c.bf16 %v1400, %v1400
    %v1465 = vpack.c.bf16 %v1401, %v1401
    %v1466 = vpack.c.bf16 %v1402, %v1402
    %v1467 = vpack.c.bf16 %v1403, %v1403
    %v1468 = vpack.c.bf16 %v1404, %v1404
    %v1469 = vpack.c.bf16 %v1405, %v1405
    %v1470 = vpack.c.bf16 %v1406, %v1406
    %v1471 = vpack.c.bf16 %v1407, %v1407
    %v1472 = vpack.c.bf16 %v1408, %v1408
    %v1473 = vpack.c.bf16 %v1409, %v1409
    %v1474 = vpack.c.bf16 %v1410, %v1410
    %v1475 = vpack.c.bf16 %v1411, %v1411
    %v1476 = vpack.c.bf16 %v1412, %v1412
    %v1477 = vpack.c.bf16 %v1413, %v1413
    %v1478 = vpack.c.bf16 %v1414, %v1414
    %v1479 = vpack.c.bf16 %v1415, %v1415
    %v1480 = vpack.c.bf16 %v1416, %v1416
    %v1481 = vpack.c.bf16 %v1417, %v1417
    %v1482 = vpack.c.bf16 %v1418, %v1418
    %v1483 = vpack.c.bf16 %v1419, %v1419
    %v1484 = vpack.c.bf16 %v1420, %v1420
    %v1485 = vpack.c.bf16 %v1421, %v1421
    %v1486 = vpack.c.bf16 %v1422, %v1422
    %v1487 = vpack.c.bf16 %v1423, %v1423
    %v1488 = vpack.c.bf16 %v1424, %v1424
    %v1489 = vpack.c.bf16 %v1425, %v1425
    %v1490 = vpack.c.bf16 %v1426, %v1426
    %v1491 = vpack.c.bf16 %v1427, %v1427
    %v1492 = vpack.c.bf16 %v1428, %v1428
    %v1493 = vpack.c.bf16 %v1429, %v1429
    %v1494 = vpack.c.bf16 %v1430, %v1430
    %v1495 = vpack.c.bf16 %v1431, %v1431
    %v1496 = vpack.c.bf16 %v1432, %v1432
    %v1497 = vpack.c.bf16 %v1433, %v1433
    %v1498 = vpack.c.bf16 %v1434, %v1434
    %v1499 = vpack.c.bf16 %v1435, %v1435
    %v1500 = vpack.c.bf16 %v1436, %v1436
    %v1501 = vpack.c.bf16 %v1437, %v1437
    %v1502 = vpack.c.bf16 %v1438, %v1438
    %v1503 = vpack.c.bf16 %v1439, %v1439
    %v1504 = vpack.c.bf16 %v1440, %v1440
    %v1505 = vpack.c.bf16 %v1441, %v1441
    %v1506 = vpack.c.bf16 %v1442, %v1442
    %v1507 = vpack.c.bf16 %v1443, %v1443
    %v1508 = vpack.c.bf16 %v1444, %v1444
    %v1509 = vpack.c.bf16 %v1445, %v1445
    %v1510 = vpack.c.bf16 %v1446, %v1446
    %v1511 = vpack.c.bf16 %v1447, %v1447
    %v1512 = vpack.c.bf16 %v1448, %v1448
    %v1513 = vpack.c.bf16 %v1449, %v1449
    %v1514 = vpack.c.bf16 %v1450, %v1450
    %v1515 = vpack.c.bf16 %v1451, %v1451
    %v1516 = vpack.c.bf16 %v1452, %v1452
    %v1517 = vpack.c.bf16 %v1453, %v1453
    %v1518 = vpack.c.bf16 %v1454, %v1454
    %v1519 = vpack.c.bf16 %v1455, %v1455
    %v1520 = vpack.c.bf16 %v1456, %v1456
    %v1521 = vpack.c.bf16 %v1457, %v1457
    %v1522 = vpack.c.bf16 %v1458, %v1458
    %v1523 = vpack.c.bf16 %v1459, %v1459
    %v1524 = vpack.c.bf16 %v1460, %v1460
    %v1525 = vpack.c.bf16 %v1461, %v1461
    %v1526 = vpack.c.bf16 %v1462, %v1462
    %vm1527 = vcmask 257024
    %1528 = vst.msk [vmem:[%s3] sm:$0xf] %vm1527, %v1463
    %1529 = vst.msk [vmem:[%s3 + $0x4] sm:$0xf] %vm1527, %v1464
    %1530 = vst.msk [vmem:[%s3 + $0x8] sm:$0xf] %vm1527, %v1465
    %1531 = vst.msk [vmem:[%s3 + $0xc] sm:$0xf] %vm1527, %v1466
    %1532 = vst.msk [vmem:[%s3 + $0x10] sm:$0xf] %vm1527, %v1467
    %1533 = vst.msk [vmem:[%s3 + $0x14] sm:$0xf] %vm1527, %v1468
    %1534 = vst.msk [vmem:[%s3 + $0x18] sm:$0xf] %vm1527, %v1469
    %1535 = vst.msk [vmem:[%s3 + $0x1c] sm:$0xf] %vm1527, %v1470
    %1536 = vst.msk [vmem:[%s3 + $0x20] sm:$0xf] %vm1527, %v1471
    %1537 = vst.msk [vmem:[%s3 + $0x24] sm:$0xf] %vm1527, %v1472
    %1538 = vst.msk [vmem:[%s3 + $0x28] sm:$0xf] %vm1527, %v1473
    %1539 = vst.msk [vmem:[%s3 + $0x2c] sm:$0xf] %vm1527, %v1474
    %1540 = vst.msk [vmem:[%s3 + $0x30] sm:$0xf] %vm1527, %v1475
    %1541 = vst.msk [vmem:[%s3 + $0x34] sm:$0xf] %vm1527, %v1476
    %1542 = vst.msk [vmem:[%s3 + $0x38] sm:$0xf] %vm1527, %v1477
    %1543 = vst.msk [vmem:[%s3 + $0x3c] sm:$0xf] %vm1527, %v1478
    %1544 = vst.msk [vmem:[%s3 + $0x40] sm:$0xf] %vm1527, %v1479
    %1545 = vst.msk [vmem:[%s3 + $0x44] sm:$0xf] %vm1527, %v1480
    %1546 = vst.msk [vmem:[%s3 + $0x48] sm:$0xf] %vm1527, %v1481
    %1547 = vst.msk [vmem:[%s3 + $0x4c] sm:$0xf] %vm1527, %v1482
    %1548 = vst.msk [vmem:[%s3 + $0x50] sm:$0xf] %vm1527, %v1483
    %1549 = vst.msk [vmem:[%s3 + $0x54] sm:$0xf] %vm1527, %v1484
    %1550 = vst.msk [vmem:[%s3 + $0x58] sm:$0xf] %vm1527, %v1485
    %1551 = vst.msk [vmem:[%s3 + $0x5c] sm:$0xf] %vm1527, %v1486
    %1552 = vst.msk [vmem:[%s3 + $0x60] sm:$0xf] %vm1527, %v1487
    %1553 = vst.msk [vmem:[%s3 + $0x64] sm:$0xf] %vm1527, %v1488
    %1554 = vst.msk [vmem:[%s3 + $0x68] sm:$0xf] %vm1527, %v1489
    %1555 = vst.msk [vmem:[%s3 + $0x6c] sm:$0xf] %vm1527, %v1490
    %1556 = vst.msk [vmem:[%s3 + $0x70] sm:$0xf] %vm1527, %v1491
    %1557 = vst.msk [vmem:[%s3 + $0x74] sm:$0xf] %vm1527, %v1492
    %1558 = vst.msk [vmem:[%s3 + $0x78] sm:$0xf] %vm1527, %v1493
    %1559 = vst.msk [vmem:[%s3 + $0x7c] sm:$0xf] %vm1527, %v1494
    %1560 = vst.msk [vmem:[%s3 + $0x80] sm:$0xf] %vm1527, %v1495
    %1561 = vst.msk [vmem:[%s3 + $0x84] sm:$0xf] %vm1527, %v1496
    %1562 = vst.msk [vmem:[%s3 + $0x88] sm:$0xf] %vm1527, %v1497
    %1563 = vst.msk [vmem:[%s3 + $0x8c] sm:$0xf] %vm1527, %v1498
    %1564 = vst.msk [vmem:[%s3 + $0x90] sm:$0xf] %vm1527, %v1499
    %1565 = vst.msk [vmem:[%s3 + $0x94] sm:$0xf] %vm1527, %v1500
    %1566 = vst.msk [vmem:[%s3 + $0x98] sm:$0xf] %vm1527, %v1501
    %1567 = vst.msk [vmem:[%s3 + $0x9c] sm:$0xf] %vm1527, %v1502
    %1568 = vst.msk [vmem:[%s3 + $0xa0] sm:$0xf] %vm1527, %v1503
    %1569 = vst.msk [vmem:[%s3 + $0xa4] sm:$0xf] %vm1527, %v1504
    %1570 = vst.msk [vmem:[%s3 + $0xa8] sm:$0xf] %vm1527, %v1505
    %1571 = vst.msk [vmem:[%s3 + $0xac] sm:$0xf] %vm1527, %v1506
    %1572 = vst.msk [vmem:[%s3 + $0xb0] sm:$0xf] %vm1527, %v1507
    %1573 = vst.msk [vmem:[%s3 + $0xb4] sm:$0xf] %vm1527, %v1508
    %1574 = vst.msk [vmem:[%s3 + $0xb8] sm:$0xf] %vm1527, %v1509
    %1575 = vst.msk [vmem:[%s3 + $0xbc] sm:$0xf] %vm1527, %v1510
    %1576 = vst.msk [vmem:[%s3 + $0xc0] sm:$0xf] %vm1527, %v1511
    %1577 = vst.msk [vmem:[%s3 + $0xc4] sm:$0xf] %vm1527, %v1512
    %1578 = vst.msk [vmem:[%s3 + $0xc8] sm:$0xf] %vm1527, %v1513
    %1579 = vst.msk [vmem:[%s3 + $0xcc] sm:$0xf] %vm1527, %v1514
    %1580 = vst.msk [vmem:[%s3 + $0xd0] sm:$0xf] %vm1527, %v1515
    %1581 = vst.msk [vmem:[%s3 + $0xd4] sm:$0xf] %vm1527, %v1516
    %1582 = vst.msk [vmem:[%s3 + $0xd8] sm:$0xf] %vm1527, %v1517
    %1583 = vst.msk [vmem:[%s3 + $0xdc] sm:$0xf] %vm1527, %v1518
    %1584 = vst.msk [vmem:[%s3 + $0xe0] sm:$0xf] %vm1527, %v1519
    %1585 = vst.msk [vmem:[%s3 + $0xe4] sm:$0xf] %vm1527, %v1520
    %1586 = vst.msk [vmem:[%s3 + $0xe8] sm:$0xf] %vm1527, %v1521
    %1587 = vst.msk [vmem:[%s3 + $0xec] sm:$0xf] %vm1527, %v1522
    %1588 = vst.msk [vmem:[%s3 + $0xf0] sm:$0xf] %vm1527, %v1523
    %1589 = vst.msk [vmem:[%s3 + $0xf4] sm:$0xf] %vm1527, %v1524
    %1590 = vst.msk [vmem:[%s3 + $0xf8] sm:$0xf] %vm1527, %v1525
    %1591 = vst.msk [vmem:[%s3 + $0xfc] sm:$0xf] %vm1527, %v1526
  $region21: #{tpu_custom_call.1} parent=0 // pred_fallthru
    _
  // Predicated region
  $region22: #{tpu_custom_call.1} parent=0 // pred_check
    _
  $region23: #{tpu_custom_call.1} parent=0 // pred_check_branch
    %1593 = sbr.rel (0) target = $region25
  $region24: #{tpu_custom_call.1} parent=0 // pred_region
    _
  $region25: #{tpu_custom_call.1} parent=0 // pred_fallthru
    _
  // Predicated region
  $region26: #{tpu_custom_call.1} parent=0 // pred_check
    _
  $region27: #{tpu_custom_call.1} parent=0 // pred_check_branch
    %1595 = sbr.rel (0) target = $region29
  $region28: #{tpu_custom_call.1} parent=0 // pred_region
    _
  $region29: #{tpu_custom_call.1} parent=0 // pred_fallthru
    _

</llo_original>
